<compile_context>
chip_gen: v7x
topology: tpu7x:2x2x1
jax: 0.10.0
libtpu: 0.0.40
codegen_flags: <defaults>
</compile_context>

<pallas_src>
import jax
import jax.numpy as jnp
from jax import lax
from jax.experimental import pallas as pl
from jax.experimental.pallas import tpu as pltpu

EPS = 1e-5          # nn.BatchNorm2d default eps
NEG_SLOPE = 0.01    # F.leaky_relu default negative_slope (as in the reference)
KH = KW = 4         # kernel size of every disc_conv layer
LANE = 128          # TPU lane width


def _vmem_spec():
    return pl.BlockSpec(memory_space=pltpu.MemorySpace.VMEM)


def _pad_axis(x, axis, mult):
    pad = (-x.shape[axis]) % mult
    if pad == 0:
        return x
    widths = [(0, 0)] * x.ndim
    widths[axis] = (0, pad)
    return jnp.pad(x, widths)


def _row_tile(m, target=512):
    # Largest row tile <= target dividing m.  Per-grid-step overhead ~0.35us:
    # 512-row tiles reach ~85% of HBM roofline vs ~30% at 128-row tiles.
    for t in (target, 256, 128):
        if m >= t and m % t == 0:
            return t
    # TODO(synk): fallback puts the whole extent in one block; fine for the tiny
    # residual cases here (M < 128) but fragile for large oddly-sized M.
    return m


# --------------------------- Pallas kernels -----------------------------------
def _conv_lrelu_kernel(p_ref, w_ref, o_ref):
    # one fused MXU matmul over all 16 taps (K = 16*Cin), LeakyReLU epilogue
    y = jnp.dot(p_ref[...], w_ref[...], preferred_element_type=jnp.float32)
    o_ref[...] = jnp.where(y >= 0.0, y, NEG_SLOPE * y).astype(o_ref.dtype)


def _conv_stats_kernel(p_ref, w_ref, y_ref, s_ref):
    # BN pass 1: matmul, stream conv output, accumulate per-column sum/sumsq.
    i = pl.program_id(0)
    y = jnp.dot(p_ref[...], w_ref[...], preferred_element_type=jnp.float32)
    y_ref[...] = y

    @pl.when(i == 0)
    def _():
        s_ref[...] = jnp.zeros_like(s_ref)

    # fused single pass over the live f32 tile (no full-size y^2 temp); the
    # stats block is VMEM-resident across the whole "arbitrary" row axis.
    s_ref[0:1, :] += jnp.sum(y, axis=0, keepdims=True)
    s_ref[1:2, :] += jnp.sum(y * y, axis=0, keepdims=True)


def _bn_lrelu_kernel(y_ref, sc_ref, sh_ref, o_ref):
    # BN pass 2: folded scale/shift + LeakyReLU, fully parallel over row tiles.
    y = y_ref[...] * sc_ref[...] + sh_ref[...]
    o_ref[...] = jnp.where(y >= 0.0, y, NEG_SLOPE * y).astype(o_ref.dtype)


def _fc_kernel(x_ref, w_ref, b_ref, o_ref):
    # single output feature: VPU multiply + lane reduction (no 128-wide padded
    # MXU output columns / extra writeback).
    o_ref[...] = (jnp.sum(x_ref[...] * w_ref[...], axis=1, keepdims=True)
                  + b_ref[...]).astype(o_ref.dtype)


# ------------------------------ layer wrappers ---------------------------------
def _im2col(x_nhwc):
    """stride-2, k=4, pad=1 patch extraction (XLA glue, runs in x's dtype)."""
    N, H, W, Cin = x_nhwc.shape
    OH, OW = H // 2, W // 2
    xp = jnp.pad(x_nhwc, ((0, 0), (1, 1), (1, 1), (0, 0)))
    cols = [
        lax.slice(xp, (0, kh, kw, 0),
                  (N, kh + 2 * (OH - 1) + 1, kw + 2 * (OW - 1) + 1, Cin),
                  (1, 2, 2, 1))
        for kh in range(KH) for kw in range(KW)
    ]
    patches = jnp.concatenate(cols, axis=-1).reshape(N * OH * OW, KH * KW * Cin)
    return patches, OH, OW


def conv_bn_lrelu(x_nhwc, w_torch, gamma=None, beta=None, *, batch_norm):
    """Conv2d(k=4, s=2, p=1, bias=False) [+ BatchNorm2d] + LeakyReLU(0.01).

    x_nhwc  : (N, H, W, Cin) float32
    w_torch : (Cout, Cin, 4, 4)   -- nn.Conv2d weight layout
    """
    N, H, W, Cin = x_nhwc.shape
    Cout = w_torch.shape[0]

    # bf16 matmul operands (MXU-native on v5e/v6e/v7x) with f32 accumulation;
    # building patches in bf16 also halves the im2col HBM round-trip bytes.
    patches, OH, OW = _im2col(x_nhwc.astype(jnp.bfloat16))
    M = N * OH * OW

    # weight (Cout,Cin,kh,kw) -> (kh,kw,Cin,Cout) -> (16*Cin, Cout), bf16
    wmat = jnp.transpose(w_torch, (2, 3, 1, 0)).reshape(KH * KW * Cin, Cout)
    wmat = wmat.astype(jnp.bfloat16)

    # pad K (taps*Cin) to a lane multiple for full MXU tiles
    patches = _pad_axis(patches, 1, LANE)
    wmat = _pad_axis(wmat, 0, LANE)
    Kp = wmat.shape[0]

    # lane-dense output padding only pays when Cout is wide enough; at tiny
    # conv_dim keep the natural width (masked stores beat 16x write ampl.)
    if Cout >= 64:
        wmat = _pad_axis(wmat, 1, LANE)
    Cp = wmat.shape[1]

    TM = _row_tile(M)
    grid = (M // TM,)

    if not batch_norm:
        out = pl.pallas_call(
            _conv_lrelu_kernel,
            out_shape=jax.ShapeDtypeStruct((M, Cp), jnp.float32),
            grid=grid,
            in_specs=[pl.BlockSpec((TM, Kp), lambda i: (i, 0)),
                      pl.BlockSpec((Kp, Cp), lambda i: (0, 0))],
            out_specs=pl.BlockSpec((TM, Cp), lambda i: (i, 0)),
            compiler_params=pltpu.CompilerParams(
                dimension_semantics=("parallel",)),
        )(patches, wmat)
    else:
        # ---- pass 1: matmul + streamed conv output + per-column stats -------
        # (accumulator output -> "arbitrary" axis; on v7x this pass uses one
        #  TC, the normalize pass below is fully parallel.)
        y, stats = pl.pallas_call(
            _conv_stats_kernel,
            out_shape=(jax.ShapeDtypeStruct((M, Cp), jnp.float32),
                       jax.ShapeDtypeStruct((2, Cp), jnp.float32)),
            grid=grid,
            in_specs=[pl.BlockSpec((TM, Kp), lambda i: (i, 0)),
                      pl.BlockSpec((Kp, Cp), lambda i: (0, 0))],
            out_specs=(pl.BlockSpec((TM, Cp), lambda i: (i, 0)),
                       pl.BlockSpec((2, Cp), lambda i: (0, 0))),
            compiler_params=pltpu.CompilerParams(
                dimension_semantics=("arbitrary",)),
        )(patches, wmat)

        # tiny (C,)-sized arithmetic: fold training-mode BN into scale/shift.
        inv_m = 1.0 / M
        mean = stats[0:1, :] * inv_m
        var = jnp.maximum(stats[1:2, :] * inv_m - mean * mean, 0.0)  # guard cancellation
        g = gamma.reshape(1, Cout).astype(jnp.float32)
        b = beta.reshape(1, Cout).astype(jnp.float32)
        if Cp != Cout:
            g = jnp.pad(g, ((0, 0), (0, Cp - Cout)))
            b = jnp.pad(b, ((0, 0), (0, Cp - Cout)))
        scale = g * lax.rsqrt(var + EPS)
        shift = b - mean * scale

        # ---- pass 2: normalize + LeakyReLU (row-tiled, parallel) ------------
        out = pl.pallas_call(
            _bn_lrelu_kernel,
            out_shape=jax.ShapeDtypeStruct((M, Cp), jnp.float32),
            grid=grid,
            in_specs=[pl.BlockSpec((TM, Cp), lambda i: (i, 0)),
                      pl.BlockSpec((1, Cp), lambda i: (0, 0)),
                      pl.BlockSpec((1, Cp), lambda i: (0, 0))],
            out_specs=pl.BlockSpec((TM, Cp), lambda i: (i, 0)),
            compiler_params=pltpu.CompilerParams(
                dimension_semantics=("parallel",)),
        )(y, scale, shift)

    if Cp != Cout:
        out = out[:, :Cout]
    return out.reshape(N, OH, OW, Cout)


def fc(x, w_row, b):
    """x:(N,K) f32 @ w_row:(1,K) (already NHWC-flatten ordered) + b:(1,1)."""
    N, _ = x.shape
    return pl.pallas_call(
        _fc_kernel,
        out_shape=jax.ShapeDtypeStruct((N, 1), jnp.float32),
        in_specs=[_vmem_spec()] * 3,
        out_specs=_vmem_spec(),
    )(x, w_row, b)


# ------------------------------ Discriminator ---------------------------------
class DiscriminatorPallas:
    def __init__(self, conv_dim, key):
        self.conv_dim = conv_dim
        d = conv_dim
        ks = jax.random.split(key, 5)
        # nn.Conv2d weights: (Cout, Cin, 4, 4), bias=False
        self.w1 = 0.05 * jax.random.normal(ks[0], (d, 3, 4, 4), jnp.float32)
        self.w2 = 0.05 * jax.random.normal(ks[1], (d * 2, d, 4, 4), jnp.float32)
        self.w3 = 0.05 * jax.random.normal(ks[2], (d * 4, d * 2, 4, 4), jnp.float32)
        # BatchNorm2d affine params (PyTorch init: gamma=1, beta=0)
        self.g2 = jnp.ones((d * 2,), jnp.float32)
        self.b2 = jnp.zeros((d * 2,), jnp.float32)
        self.g3 = jnp.ones((d * 4,), jnp.float32)
        self.b3 = jnp.zeros((d * 4,), jnp.float32)
        # nn.Linear(d*4*4*4, 1): weight rows are in PyTorch (C,H,W)-flatten
        # order; permute ONCE to NHWC (H,W,C) flatten order so the forward
        # pass needs no activation transpose before the FC.
        w_pt = 0.05 * jax.random.normal(ks[3], (d * 4 * 4 * 4,), jnp.float32)
        self.fc_w = jnp.transpose(w_pt.reshape(d * 4, 4, 4), (1, 2, 0)).reshape(1, -1)
        self.fc_b = (0.05 * jax.random.normal(ks[4], (1,), jnp.float32)).reshape(1, 1)
        # TODO(synk): BatchNorm running_mean/var buffer updates (train-time side
        # effect) are not modeled; forward uses batch statistics (train mode).

    def __call__(self, x_nchw):
        x = jnp.transpose(x_nchw, (0, 2, 3, 1))                    # NCHW -> NHWC once
        x = conv_bn_lrelu(x, self.w1, batch_norm=False)            # (N,16,16,d)
        x = conv_bn_lrelu(x, self.w2, self.g2, self.b2, batch_norm=True)   # (N,8,8,2d)
        x = conv_bn_lrelu(x, self.w3, self.g3, self.b3, batch_norm=True)   # (N,4,4,4d)
        x = x.reshape(x.shape[0], -1)      # NHWC flatten; fc_w pre-permuted to match
        return fc(x, self.fc_w, self.fc_b)                         # (N, 1)


if __name__ == "__main__":
    key = jax.random.PRNGKey(0)
    k_params, k_x = jax.random.split(key)

    conv_dim = 8
    disc = DiscriminatorPallas(conv_dim, k_params)

    x = jax.random.normal(k_x, (2, 3, 32, 32), jnp.float32)        # batch=2
    out = jax.jit(disc.__call__)(x)
    out = jax.block_until_ready(out)

    assert out.shape == (2, 1), out.shape
    assert bool(jnp.all(jnp.isfinite(out)))
    print("KERNEL_OK")
</pallas_src>

<mosaic_0001>
module attributes {stable_mosaic.version = 11 : i64} {
  func.func @_conv_lrelu_kernel(%arg0: i32, %arg1: memref<512x128xbf16, #tpu.memory_space<vmem>>, %arg2: memref<128x8xbf16, #tpu.memory_space<vmem>>, %arg3: memref<512x8xf32, #tpu.memory_space<vmem>>) attributes {dimension_semantics = [#tpu.dimension_semantics<parallel>], iteration_bounds = array<i64: 1>, scalar_prefetch = 0 : i64, scratch_operands = 0 : i64, tpu.core_type = #tpu.core_type<tc>, window_params = [{transform_indices = @transform_0, window_bounds = array<i64: 512, 128>}, {pipeline_mode = #tpu.pipeline_mode<synchronous>, transform_indices = @transform_1, window_bounds = array<i64: 128, 8>}, {transform_indices = @transform_2, window_bounds = array<i64: 512, 8>}]} {
    %c0 = arith.constant 0 : index
    %c0_0 = arith.constant 0 : index
    %0 = vector.load %arg1[%c0, %c0_0] : memref<512x128xbf16, #tpu.memory_space<vmem>>, vector<512x128xbf16>
    %c0_1 = arith.constant 0 : index
    %c0_2 = arith.constant 0 : index
    %1 = vector.load %arg2[%c0_1, %c0_2] : memref<128x8xbf16, #tpu.memory_space<vmem>>, vector<128x8xbf16>
    %cst = arith.constant dense<0.000000e+00> : vector<512x8xf32>
    %2 = tpu.matmul %0, %1, %cst {dimension_numbers = #tpu.dot_dimension_numbers<[1], [0], [0], [1], [0, 0, 1, 1], [], []>} : vector<512x128xbf16>, vector<128x8xbf16>, vector<512x8xf32> -> vector<512x8xf32>
    %cst_3 = arith.constant 0.000000e+00 : f32
    %3 = vector.broadcast %cst_3 : f32 to vector<512x8xf32>
    %4 = arith.cmpf oge, %2, %3 : vector<512x8xf32>
    %cst_4 = arith.constant 0.00999999977 : f32
    %5 = vector.broadcast %cst_4 : f32 to vector<512x8xf32>
    %6 = arith.mulf %5, %2 : vector<512x8xf32>
    %7 = arith.select %4, %2, %6 : vector<512x8xi1>, vector<512x8xf32>
    %c0_5 = arith.constant 0 : index
    %c0_6 = arith.constant 0 : index
    %8 = vector.load %arg3[%c0_5, %c0_6] : memref<512x8xf32, #tpu.memory_space<vmem>>, vector<512x8xf32>
    tpu.vector_store %arg3[%c0_5, %c0_6], %7 {strides = array<i32>} : memref<512x8xf32, #tpu.memory_space<vmem>>, vector<512x8xf32>,
    return
  }
  func.func @transform_0(%arg0: i32) -> (i32, i32) {
    %c0_i32 = arith.constant 0 : i32
    %c0_i32_0 = arith.constant 0 : i32
    return %arg0, %c0_i32 : i32, i32
  }
  func.func @transform_1(%arg0: i32) -> (i32, i32) {
    %c0_i32 = arith.constant 0 : i32
    %c0_i32_0 = arith.constant 0 : i32
    %c0_i32_1 = arith.constant 0 : i32
    return %c0_i32, %c0_i32_0 : i32, i32
  }
  func.func @transform_2(%arg0: i32) -> (i32, i32) {
    %c0_i32 = arith.constant 0 : i32
    %c0_i32_0 = arith.constant 0 : i32
    return %arg0, %c0_i32 : i32, i32
  }
}

module attributes {stable_mosaic.version = 11 : i64} {
  func.func @_conv_stats_kernel(%arg0: i32, %arg1: memref<128x128xbf16, #tpu.memory_space<vmem>>, %arg2: memref<128x16xbf16, #tpu.memory_space<vmem>>, %arg3: memref<128x16xf32, #tpu.memory_space<vmem>>, %arg4: memref<2x16xf32, #tpu.memory_space<vmem>>) attributes {dimension_semantics = [#tpu.dimension_semantics<arbitrary>], iteration_bounds = array<i64: 1>, scalar_prefetch = 0 : i64, scratch_operands = 0 : i64, tpu.core_type = #tpu.core_type<tc>, window_params = [{transform_indices = @transform_0, window_bounds = array<i64: 128, 128>}, {pipeline_mode = #tpu.pipeline_mode<synchronous>, transform_indices = @transform_1, window_bounds = array<i64: 128, 16>}, {transform_indices = @transform_2, window_bounds = array<i64: 128, 16>}, {pipeline_mode = #tpu.pipeline_mode<synchronous>, transform_indices = @transform_3, window_bounds = array<i64: 2, 16>}]} {
    %c0 = arith.constant 0 : index
    %c0_0 = arith.constant 0 : index
    %0 = vector.load %arg1[%c0, %c0_0] : memref<128x128xbf16, #tpu.memory_space<vmem>>, vector<128x128xbf16>
    %c0_1 = arith.constant 0 : index
    %c0_2 = arith.constant 0 : index
    %1 = vector.load %arg2[%c0_1, %c0_2] : memref<128x16xbf16, #tpu.memory_space<vmem>>, vector<128x16xbf16>
    %cst = arith.constant dense<0.000000e+00> : vector<128x16xf32>
    %2 = tpu.matmul %0, %1, %cst {dimension_numbers = #tpu.dot_dimension_numbers<[1], [0], [0], [1], [0, 0, 1, 1], [], []>} : vector<128x128xbf16>, vector<128x16xbf16>, vector<128x16xf32> -> vector<128x16xf32>
    %c0_3 = arith.constant 0 : index
    %c0_4 = arith.constant 0 : index
    %3 = vector.load %arg3[%c0_3, %c0_4] : memref<128x16xf32, #tpu.memory_space<vmem>>, vector<128x16xf32>
    tpu.vector_store %arg3[%c0_3, %c0_4], %2 {strides = array<i32>} : memref<128x16xf32, #tpu.memory_space<vmem>>, vector<128x16xf32>,
    %c0_i32 = arith.constant 0 : i32
    %4 = arith.cmpi eq, %arg0, %c0_i32 : i32
    %5 = arith.extui %4 : i1 to i32
    %c0_i32_5 = arith.constant 0 : i32
    %6 = arith.cmpi ne, %5, %c0_i32_5 : i32
    scf.if %6 {
      %cst_15 = arith.constant 0.000000e+00 : f32
      %18 = vector.broadcast %cst_15 : f32 to vector<2x16xf32>
      %c0_16 = arith.constant 0 : index
      %c0_17 = arith.constant 0 : index
      %19 = vector.load %arg4[%c0_16, %c0_17] : memref<2x16xf32, #tpu.memory_space<vmem>>, vector<2x16xf32>
      tpu.vector_store %arg4[%c0_16, %c0_17], %18 {strides = array<i32>} : memref<2x16xf32, #tpu.memory_space<vmem>>, vector<2x16xf32>,
    } else {
    }
    %c0_6 = arith.constant 0 : index
    %c0_7 = arith.constant 0 : index
    %7 = vector.load %arg4[%c0_6, %c0_7] : memref<2x16xf32, #tpu.memory_space<vmem>>, vector<1x16xf32>
    %cst_8 = arith.constant dense<0.000000e+00> : vector<16xf32>
    %8 = vector.multi_reduction <add>, %2, %cst_8 [0] : vector<128x16xf32> to vector<16xf32>
    %9 = vector.shape_cast %8 : vector<16xf32> to vector<1x16xf32>
    %10 = arith.addf %7, %9 : vector<1x16xf32>
    %c0_9 = arith.constant 0 : index
    %c0_10 = arith.constant 0 : index
    %11 = vector.load %arg4[%c0_9, %c0_10] : memref<2x16xf32, #tpu.memory_space<vmem>>, vector<1x16xf32>
    tpu.vector_store %arg4[%c0_9, %c0_10], %10 {strides = array<i32>} : memref<2x16xf32, #tpu.memory_space<vmem>>, vector<1x16xf32>,
    %c1 = arith.constant 1 : index
    %c0_11 = arith.constant 0 : index
    %12 = vector.load %arg4[%c1, %c0_11] : memref<2x16xf32, #tpu.memory_space<vmem>>, vector<1x16xf32>
    %13 = arith.mulf %2, %2 : vector<128x16xf32>
    %cst_12 = arith.constant dense<0.000000e+00> : vector<16xf32>
    %14 = vector.multi_reduction <add>, %13, %cst_12 [0] : vector<128x16xf32> to vector<16xf32>
    %15 = vector.shape_cast %14 : vector<16xf32> to vector<1x16xf32>
    %16 = arith.addf %12, %15 : vector<1x16xf32>
    %c1_13 = arith.constant 1 : index
    %c0_14 = arith.constant 0 : index
    %17 = vector.load %arg4[%c1_13, %c0_14] : memref<2x16xf32, #tpu.memory_space<vmem>>, vector<1x16xf32>
    tpu.vector_store %arg4[%c1_13, %c0_14], %16 {strides = array<i32>} : memref<2x16xf32, #tpu.memory_space<vmem>>, vector<1x16xf32>,
    return
  }
  func.func @transform_0(%arg0: i32) -> (i32, i32) {
    %c0_i32 = arith.constant 0 : i32
    %c0_i32_0 = arith.constant 0 : i32
    return %arg0, %c0_i32 : i32, i32
  }
  func.func @transform_1(%arg0: i32) -> (i32, i32) {
    %c0_i32 = arith.constant 0 : i32
    %c0_i32_0 = arith.constant 0 : i32
    %c0_i32_1 = arith.constant 0 : i32
    return %c0_i32, %c0_i32_0 : i32, i32
  }
  func.func @transform_2(%arg0: i32) -> (i32, i32) {
    %c0_i32 = arith.constant 0 : i32
    %c0_i32_0 = arith.constant 0 : i32
    return %arg0, %c0_i32 : i32, i32
  }
  func.func @transform_3(%arg0: i32) -> (i32, i32) {
    %c0_i32 = arith.constant 0 : i32
    %c0_i32_0 = arith.constant 0 : i32
    %c0_i32_1 = arith.constant 0 : i32
    return %c0_i32, %c0_i32_0 : i32, i32
  }
}

module attributes {stable_mosaic.version = 11 : i64} {
  func.func @_bn_lrelu_kernel(%arg0: i32, %arg1: memref<128x16xf32, #tpu.memory_space<vmem>>, %arg2: memref<1x16xf32, #tpu.memory_space<vmem>>, %arg3: memref<1x16xf32, #tpu.memory_space<vmem>>, %arg4: memref<128x16xf32, #tpu.memory_space<vmem>>) attributes {dimension_semantics = [#tpu.dimension_semantics<parallel>], iteration_bounds = array<i64: 1>, scalar_prefetch = 0 : i64, scratch_operands = 0 : i64, tpu.core_type = #tpu.core_type<tc>, window_params = [{transform_indices = @transform_0, window_bounds = array<i64: 128, 16>}, {pipeline_mode = #tpu.pipeline_mode<synchronous>, transform_indices = @transform_1, window_bounds = array<i64: 1, 16>}, {pipeline_mode = #tpu.pipeline_mode<synchronous>, transform_indices = @transform_2, window_bounds = array<i64: 1, 16>}, {transform_indices = @transform_3, window_bounds = array<i64: 128, 16>}]} {
    %c0 = arith.constant 0 : index
    %c0_0 = arith.constant 0 : index
    %0 = vector.load %arg1[%c0, %c0_0] : memref<128x16xf32, #tpu.memory_space<vmem>>, vector<128x16xf32>
    %c0_1 = arith.constant 0 : index
    %c0_2 = arith.constant 0 : index
    %1 = vector.load %arg2[%c0_1, %c0_2] : memref<1x16xf32, #tpu.memory_space<vmem>>, vector<1x16xf32>
    %2 = vector.broadcast %1 : vector<1x16xf32> to vector<128x16xf32>
    %3 = arith.mulf %0, %2 : vector<128x16xf32>
    %c0_3 = arith.constant 0 : index
    %c0_4 = arith.constant 0 : index
    %4 = vector.load %arg3[%c0_3, %c0_4] : memref<1x16xf32, #tpu.memory_space<vmem>>, vector<1x16xf32>
    %5 = vector.broadcast %4 : vector<1x16xf32> to vector<128x16xf32>
    %6 = arith.addf %3, %5 : vector<128x16xf32>
    %cst = arith.constant 0.000000e+00 : f32
    %7 = vector.broadcast %cst : f32 to vector<128x16xf32>
    %8 = arith.cmpf oge, %6, %7 : vector<128x16xf32>
    %cst_5 = arith.constant 0.00999999977 : f32
    %9 = vector.broadcast %cst_5 : f32 to vector<128x16xf32>
    %10 = arith.mulf %9, %6 : vector<128x16xf32>
    %11 = arith.select %8, %6, %10 : vector<128x16xi1>, vector<128x16xf32>
    %c0_6 = arith.constant 0 : index
    %c0_7 = arith.constant 0 : index
    %12 = vector.load %arg4[%c0_6, %c0_7] : memref<128x16xf32, #tpu.memory_space<vmem>>, vector<128x16xf32>
    tpu.vector_store %arg4[%c0_6, %c0_7], %11 {strides = array<i32>} : memref<128x16xf32, #tpu.memory_space<vmem>>, vector<128x16xf32>,
    return
  }
  func.func @transform_0(%arg0: i32) -> (i32, i32) {
    %c0_i32 = arith.constant 0 : i32
    %c0_i32_0 = arith.constant 0 : i32
    return %arg0, %c0_i32 : i32, i32
  }
  func.func @transform_1(%arg0: i32) -> (i32, i32) {
    %c0_i32 = arith.constant 0 : i32
    %c0_i32_0 = arith.constant 0 : i32
    %c0_i32_1 = arith.constant 0 : i32
    return %c0_i32, %c0_i32_0 : i32, i32
  }
  func.func @transform_2(%arg0: i32) -> (i32, i32) {
    %c0_i32 = arith.constant 0 : i32
    %c0_i32_0 = arith.constant 0 : i32
    %c0_i32_1 = arith.constant 0 : i32
    return %c0_i32, %c0_i32_0 : i32, i32
  }
  func.func @transform_3(%arg0: i32) -> (i32, i32) {
    %c0_i32 = arith.constant 0 : i32
    %c0_i32_0 = arith.constant 0 : i32
    return %arg0, %c0_i32 : i32, i32
  }
}

module attributes {stable_mosaic.version = 11 : i64} {
  func.func @_conv_stats_kernel(%arg0: i32, %arg1: memref<32x256xbf16, #tpu.memory_space<vmem>>, %arg2: memref<256x32xbf16, #tpu.memory_space<vmem>>, %arg3: memref<32x32xf32, #tpu.memory_space<vmem>>, %arg4: memref<2x32xf32, #tpu.memory_space<vmem>>) attributes {dimension_semantics = [#tpu.dimension_semantics<arbitrary>], iteration_bounds = array<i64: 1>, scalar_prefetch = 0 : i64, scratch_operands = 0 : i64, tpu.core_type = #tpu.core_type<tc>, window_params = [{transform_indices = @transform_0, window_bounds = array<i64: 32, 256>}, {pipeline_mode = #tpu.pipeline_mode<synchronous>, transform_indices = @transform_1, window_bounds = array<i64: 256, 32>}, {transform_indices = @transform_2, window_bounds = array<i64: 32, 32>}, {pipeline_mode = #tpu.pipeline_mode<synchronous>, transform_indices = @transform_3, window_bounds = array<i64: 2, 32>}]} {
    %c0 = arith.constant 0 : index
    %c0_0 = arith.constant 0 : index
    %0 = vector.load %arg1[%c0, %c0_0] : memref<32x256xbf16, #tpu.memory_space<vmem>>, vector<32x256xbf16>
    %c0_1 = arith.constant 0 : index
    %c0_2 = arith.constant 0 : index
    %1 = vector.load %arg2[%c0_1, %c0_2] : memref<256x32xbf16, #tpu.memory_space<vmem>>, vector<256x32xbf16>
    %cst = arith.constant dense<0.000000e+00> : vector<32x32xf32>
    %2 = tpu.matmul %0, %1, %cst {dimension_numbers = #tpu.dot_dimension_numbers<[1], [0], [0], [1], [0, 0, 1, 1], [], []>} : vector<32x256xbf16>, vector<256x32xbf16>, vector<32x32xf32> -> vector<32x32xf32>
    %c0_3 = arith.constant 0 : index
    %c0_4 = arith.constant 0 : index
    %3 = vector.load %arg3[%c0_3, %c0_4] : memref<32x32xf32, #tpu.memory_space<vmem>>, vector<32x32xf32>
    tpu.vector_store %arg3[%c0_3, %c0_4], %2 {strides = array<i32>} : memref<32x32xf32, #tpu.memory_space<vmem>>, vector<32x32xf32>,
    %c0_i32 = arith.constant 0 : i32
    %4 = arith.cmpi eq, %arg0, %c0_i32 : i32
    %5 = arith.extui %4 : i1 to i32
    %c0_i32_5 = arith.constant 0 : i32
    %6 = arith.cmpi ne, %5, %c0_i32_5 : i32
    scf.if %6 {
      %cst_15 = arith.constant 0.000000e+00 : f32
      %18 = vector.broadcast %cst_15 : f32 to vector<2x32xf32>
      %c0_16 = arith.constant 0 : index
      %c0_17 = arith.constant 0 : index
      %19 = vector.load %arg4[%c0_16, %c0_17] : memref<2x32xf32, #tpu.memory_space<vmem>>, vector<2x32xf32>
      tpu.vector_store %arg4[%c0_16, %c0_17], %18 {strides = array<i32>} : memref<2x32xf32, #tpu.memory_space<vmem>>, vector<2x32xf32>,
    } else {
    }
    %c0_6 = arith.constant 0 : index
    %c0_7 = arith.constant 0 : index
    %7 = vector.load %arg4[%c0_6, %c0_7] : memref<2x32xf32, #tpu.memory_space<vmem>>, vector<1x32xf32>
    %cst_8 = arith.constant dense<0.000000e+00> : vector<32xf32>
    %8 = vector.multi_reduction <add>, %2, %cst_8 [0] : vector<32x32xf32> to vector<32xf32>
    %9 = vector.shape_cast %8 : vector<32xf32> to vector<1x32xf32>
    %10 = arith.addf %7, %9 : vector<1x32xf32>
    %c0_9 = arith.constant 0 : index
    %c0_10 = arith.constant 0 : index
    %11 = vector.load %arg4[%c0_9, %c0_10] : memref<2x32xf32, #tpu.memory_space<vmem>>, vector<1x32xf32>
    tpu.vector_store %arg4[%c0_9, %c0_10], %10 {strides = array<i32>} : memref<2x32xf32, #tpu.memory_space<vmem>>, vector<1x32xf32>,
    %c1 = arith.constant 1 : index
    %c0_11 = arith.constant 0 : index
    %12 = vector.load %arg4[%c1, %c0_11] : memref<2x32xf32, #tpu.memory_space<vmem>>, vector<1x32xf32>
    %13 = arith.mulf %2, %2 : vector<32x32xf32>
    %cst_12 = arith.constant dense<0.000000e+00> : vector<32xf32>
    %14 = vector.multi_reduction <add>, %13, %cst_12 [0] : vector<32x32xf32> to vector<32xf32>
    %15 = vector.shape_cast %14 : vector<32xf32> to vector<1x32xf32>
    %16 = arith.addf %12, %15 : vector<1x32xf32>
    %c1_13 = arith.constant 1 : index
    %c0_14 = arith.constant 0 : index
    %17 = vector.load %arg4[%c1_13, %c0_14] : memref<2x32xf32, #tpu.memory_space<vmem>>, vector<1x32xf32>
    tpu.vector_store %arg4[%c1_13, %c0_14], %16 {strides = array<i32>} : memref<2x32xf32, #tpu.memory_space<vmem>>, vector<1x32xf32>,
    return
  }
  func.func @transform_0(%arg0: i32) -> (i32, i32) {
    %c0_i32 = arith.constant 0 : i32
    %c0_i32_0 = arith.constant 0 : i32
    return %arg0, %c0_i32 : i32, i32
  }
  func.func @transform_1(%arg0: i32) -> (i32, i32) {
    %c0_i32 = arith.constant 0 : i32
    %c0_i32_0 = arith.constant 0 : i32
    %c0_i32_1 = arith.constant 0 : i32
    return %c0_i32, %c0_i32_0 : i32, i32
  }
  func.func @transform_2(%arg0: i32) -> (i32, i32) {
    %c0_i32 = arith.constant 0 : i32
    %c0_i32_0 = arith.constant 0 : i32
    return %arg0, %c0_i32 : i32, i32
  }
  func.func @transform_3(%arg0: i32) -> (i32, i32) {
    %c0_i32 = arith.constant 0 : i32
    %c0_i32_0 = arith.constant 0 : i32
    %c0_i32_1 = arith.constant 0 : i32
    return %c0_i32, %c0_i32_0 : i32, i32
  }
}

module attributes {stable_mosaic.version = 11 : i64} {
  func.func @_bn_lrelu_kernel(%arg0: i32, %arg1: memref<32x32xf32, #tpu.memory_space<vmem>>, %arg2: memref<1x32xf32, #tpu.memory_space<vmem>>, %arg3: memref<1x32xf32, #tpu.memory_space<vmem>>, %arg4: memref<32x32xf32, #tpu.memory_space<vmem>>) attributes {dimension_semantics = [#tpu.dimension_semantics<parallel>], iteration_bounds = array<i64: 1>, scalar_prefetch = 0 : i64, scratch_operands = 0 : i64, tpu.core_type = #tpu.core_type<tc>, window_params = [{transform_indices = @transform_0, window_bounds = array<i64: 32, 32>}, {pipeline_mode = #tpu.pipeline_mode<synchronous>, transform_indices = @transform_1, window_bounds = array<i64: 1, 32>}, {pipeline_mode = #tpu.pipeline_mode<synchronous>, transform_indices = @transform_2, window_bounds = array<i64: 1, 32>}, {transform_indices = @transform_3, window_bounds = array<i64: 32, 32>}]} {
    %c0 = arith.constant 0 : index
    %c0_0 = arith.constant 0 : index
    %0 = vector.load %arg1[%c0, %c0_0] : memref<32x32xf32, #tpu.memory_space<vmem>>, vector<32x32xf32>
    %c0_1 = arith.constant 0 : index
    %c0_2 = arith.constant 0 : index
    %1 = vector.load %arg2[%c0_1, %c0_2] : memref<1x32xf32, #tpu.memory_space<vmem>>, vector<1x32xf32>
    %2 = vector.broadcast %1 : vector<1x32xf32> to vector<32x32xf32>
    %3 = arith.mulf %0, %2 : vector<32x32xf32>
    %c0_3 = arith.constant 0 : index
    %c0_4 = arith.constant 0 : index
    %4 = vector.load %arg3[%c0_3, %c0_4] : memref<1x32xf32, #tpu.memory_space<vmem>>, vector<1x32xf32>
    %5 = vector.broadcast %4 : vector<1x32xf32> to vector<32x32xf32>
    %6 = arith.addf %3, %5 : vector<32x32xf32>
    %cst = arith.constant 0.000000e+00 : f32
    %7 = vector.broadcast %cst : f32 to vector<32x32xf32>
    %8 = arith.cmpf oge, %6, %7 : vector<32x32xf32>
    %cst_5 = arith.constant 0.00999999977 : f32
    %9 = vector.broadcast %cst_5 : f32 to vector<32x32xf32>
    %10 = arith.mulf %9, %6 : vector<32x32xf32>
    %11 = arith.select %8, %6, %10 : vector<32x32xi1>, vector<32x32xf32>
    %c0_6 = arith.constant 0 : index
    %c0_7 = arith.constant 0 : index
    %12 = vector.load %arg4[%c0_6, %c0_7] : memref<32x32xf32, #tpu.memory_space<vmem>>, vector<32x32xf32>
    tpu.vector_store %arg4[%c0_6, %c0_7], %11 {strides = array<i32>} : memref<32x32xf32, #tpu.memory_space<vmem>>, vector<32x32xf32>,
    return
  }
  func.func @transform_0(%arg0: i32) -> (i32, i32) {
    %c0_i32 = arith.constant 0 : i32
    %c0_i32_0 = arith.constant 0 : i32
    return %arg0, %c0_i32 : i32, i32
  }
  func.func @transform_1(%arg0: i32) -> (i32, i32) {
    %c0_i32 = arith.constant 0 : i32
    %c0_i32_0 = arith.constant 0 : i32
    %c0_i32_1 = arith.constant 0 : i32
    return %c0_i32, %c0_i32_0 : i32, i32
  }
  func.func @transform_2(%arg0: i32) -> (i32, i32) {
    %c0_i32 = arith.constant 0 : i32
    %c0_i32_0 = arith.constant 0 : i32
    %c0_i32_1 = arith.constant 0 : i32
    return %c0_i32, %c0_i32_0 : i32, i32
  }
  func.func @transform_3(%arg0: i32) -> (i32, i32) {
    %c0_i32 = arith.constant 0 : i32
    %c0_i32_0 = arith.constant 0 : i32
    return %arg0, %c0_i32 : i32, i32
  }
}

module attributes {stable_mosaic.version = 11 : i64} {
  func.func @_fc_kernel(%arg0: memref<2x512xf32, #tpu.memory_space<vmem>>, %arg1: memref<1x512xf32, #tpu.memory_space<vmem>>, %arg2: memref<1x1xf32, #tpu.memory_space<vmem>>, %arg3: memref<2x1xf32, #tpu.memory_space<vmem>>) attributes {dimension_semantics = [], scalar_prefetch = 0 : i64, scratch_operands = 0 : i64, tpu.core_type = #tpu.core_type<tc>} {
    %c0 = arith.constant 0 : index
    %c0_0 = arith.constant 0 : index
    %0 = vector.load %arg0[%c0, %c0_0] : memref<2x512xf32, #tpu.memory_space<vmem>>, vector<2x512xf32>
    %c0_1 = arith.constant 0 : index
    %c0_2 = arith.constant 0 : index
    %1 = vector.load %arg1[%c0_1, %c0_2] : memref<1x512xf32, #tpu.memory_space<vmem>>, vector<1x512xf32>
    %2 = vector.broadcast %1 : vector<1x512xf32> to vector<2x512xf32>
    %3 = arith.mulf %0, %2 : vector<2x512xf32>
    %cst = arith.constant dense<0.000000e+00> : vector<2xf32>
    %4 = vector.multi_reduction <add>, %3, %cst [1] : vector<2x512xf32> to vector<2xf32>
    %5 = vector.shape_cast %4 : vector<2xf32> to vector<2x1xf32>
    %c0_3 = arith.constant 0 : index
    %c0_4 = arith.constant 0 : index
    %6 = vector.load %arg2[%c0_3, %c0_4] : memref<1x1xf32, #tpu.memory_space<vmem>>, vector<1x1xf32>
    %7 = vector.broadcast %6 : vector<1x1xf32> to vector<2x1xf32>
    %8 = arith.addf %5, %7 : vector<2x1xf32>
    %c0_5 = arith.constant 0 : index
    %c0_6 = arith.constant 0 : index
    %9 = vector.load %arg3[%c0_5, %c0_6] : memref<2x1xf32, #tpu.memory_space<vmem>>, vector<2x1xf32>
    tpu.vector_store %arg3[%c0_5, %c0_6], %8 {strides = array<i32>} : memref<2x1xf32, #tpu.memory_space<vmem>>, vector<2x1xf32>,
    return
  }
}

</mosaic_0001>

<llo_original>
// kernel: a_call__.6
$region0: #{a_call__.6}
  #allocation0 [shape = 'u32[]', space=smem, size = 0x4, offset = 0x4, fixed_abs, tag = 'smem constant byte address 0x4 - core index']
  #allocation1 [shape = 'u32[144,128]{1,0:T(1,128)}', space=vmem, size = 0x12000, scoped, tag = 'internal scratch']
  %s0 = inlined_call_operand.vmem [shape: bf16[512,128], index: 0, kind: input, shape index: {}]
  %s1 = inlined_call_operand.vmem [shape: bf16[128,8], index: 1, kind: input, shape index: {}]
  %s2 = inlined_call_operand.vmem [shape: f32[512,8], index: 2, kind: output, shape index: {}]
  %s3 = sld [smem:[#allocation0]]
  $region18: #{a_call__.6} parent=0
    _
  %s5 = ssub.s32 1, %s3
  %s6 = scalar_select 0, %s5, %s3
  // Predicated region
  $region2: #{a_call__.6} parent=0 // pred_check
    _
  $region3: #{a_call__.6} parent=0 // pred_check_branch
    %8 = sbr.rel (0) target = $region5
  $region4: #{a_call__.6} parent=0 // pred_region
    _
  $region5: #{a_call__.6} parent=0 // pred_fallthru
    _
  // Predicated region
  $region6: #{a_call__.6} parent=0 // pred_check
    _
  $region7: #{a_call__.6} parent=0 // pred_check_branch
    %10 = sbr.rel (0) target = $region9
  $region8: #{a_call__.6} parent=0 // pred_region
    _
  $region9: #{a_call__.6} parent=0 // pred_fallthru
    _
  %v12 = vld [vmem:[%s0] sm:$0xf]
  %v13 = vld [vmem:[%s0 + $0x4] sm:$0xf]
  %v14 = vld [vmem:[%s0 + $0x8] sm:$0xf]
  %v15 = vld [vmem:[%s0 + $0xc] sm:$0xf]
  %v16 = vld [vmem:[%s0 + $0x10] sm:$0xf]
  %v17 = vld [vmem:[%s0 + $0x14] sm:$0xf]
  %v18 = vld [vmem:[%s0 + $0x18] sm:$0xf]
  %v19 = vld [vmem:[%s0 + $0x1c] sm:$0xf]
  %v20 = vld [vmem:[%s0 + $0x20] sm:$0xf]
  %v21 = vld [vmem:[%s0 + $0x24] sm:$0xf]
  %v22 = vld [vmem:[%s0 + $0x28] sm:$0xf]
  %v23 = vld [vmem:[%s0 + $0x2c] sm:$0xf]
  %v24 = vld [vmem:[%s0 + $0x30] sm:$0xf]
  %v25 = vld [vmem:[%s0 + $0x34] sm:$0xf]
  %v26 = vld [vmem:[%s0 + $0x38] sm:$0xf]
  %v27 = vld [vmem:[%s0 + $0x3c] sm:$0xf]
  %v28 = vld [vmem:[%s0 + $0x40] sm:$0xf]
  %v29 = vld [vmem:[%s0 + $0x44] sm:$0xf]
  %v30 = vld [vmem:[%s0 + $0x48] sm:$0xf]
  %v31 = vld [vmem:[%s0 + $0x4c] sm:$0xf]
  %v32 = vld [vmem:[%s0 + $0x50] sm:$0xf]
  %v33 = vld [vmem:[%s0 + $0x54] sm:$0xf]
  %v34 = vld [vmem:[%s0 + $0x58] sm:$0xf]
  %v35 = vld [vmem:[%s0 + $0x5c] sm:$0xf]
  %v36 = vld [vmem:[%s0 + $0x60] sm:$0xf]
  %v37 = vld [vmem:[%s0 + $0x64] sm:$0xf]
  %v38 = vld [vmem:[%s0 + $0x68] sm:$0xf]
  %v39 = vld [vmem:[%s0 + $0x6c] sm:$0xf]
  %v40 = vld [vmem:[%s0 + $0x70] sm:$0xf]
  %v41 = vld [vmem:[%s0 + $0x74] sm:$0xf]
  %v42 = vld [vmem:[%s0 + $0x78] sm:$0xf]
  %v43 = vld [vmem:[%s0 + $0x7c] sm:$0xf]
  %v44 = vld [vmem:[%s0 + $0x80] sm:$0xf]
  %v45 = vld [vmem:[%s0 + $0x84] sm:$0xf]
  %v46 = vld [vmem:[%s0 + $0x88] sm:$0xf]
  %v47 = vld [vmem:[%s0 + $0x8c] sm:$0xf]
  %v48 = vld [vmem:[%s0 + $0x90] sm:$0xf]
  %v49 = vld [vmem:[%s0 + $0x94] sm:$0xf]
  %v50 = vld [vmem:[%s0 + $0x98] sm:$0xf]
  %v51 = vld [vmem:[%s0 + $0x9c] sm:$0xf]
  %v52 = vld [vmem:[%s0 + $0xa0] sm:$0xf]
  %v53 = vld [vmem:[%s0 + $0xa4] sm:$0xf]
  %v54 = vld [vmem:[%s0 + $0xa8] sm:$0xf]
  %v55 = vld [vmem:[%s0 + $0xac] sm:$0xf]
  %v56 = vld [vmem:[%s0 + $0xb0] sm:$0xf]
  %v57 = vld [vmem:[%s0 + $0xb4] sm:$0xf]
  %v58 = vld [vmem:[%s0 + $0xb8] sm:$0xf]
  %v59 = vld [vmem:[%s0 + $0xbc] sm:$0xf]
  %v60 = vld [vmem:[%s0 + $0xc0] sm:$0xf]
  %v61 = vld [vmem:[%s0 + $0xc4] sm:$0xf]
  %v62 = vld [vmem:[%s0 + $0xc8] sm:$0xf]
  %v63 = vld [vmem:[%s0 + $0xcc] sm:$0xf]
  %v64 = vld [vmem:[%s0 + $0xd0] sm:$0xf]
  %v65 = vld [vmem:[%s0 + $0xd4] sm:$0xf]
  %v66 = vld [vmem:[%s0 + $0xd8] sm:$0xf]
  %v67 = vld [vmem:[%s0 + $0xdc] sm:$0xf]
  %v68 = vld [vmem:[%s0 + $0xe0] sm:$0xf]
  %v69 = vld [vmem:[%s0 + $0xe4] sm:$0xf]
  %v70 = vld [vmem:[%s0 + $0xe8] sm:$0xf]
  %v71 = vld [vmem:[%s0 + $0xec] sm:$0xf]
  %v72 = vld [vmem:[%s0 + $0xf0] sm:$0xf]
  %v73 = vld [vmem:[%s0 + $0xf4] sm:$0xf]
  %v74 = vld [vmem:[%s0 + $0xf8] sm:$0xf]
  %v75 = vld [vmem:[%s0 + $0xfc] sm:$0xf]
  %v76 = vld [vmem:[%s1] sm:$0xf]
  %v77 = vld [vmem:[%s1 + $0x4] sm:$0xf]
  %v78 = vld [vmem:[%s1 + $0x8] sm:$0xf]
  %v79 = vld [vmem:[%s1 + $0xc] sm:$0xf]
  %v80 = vld [vmem:[%s1 + $0x10] sm:$0xf]
  %v81 = vld [vmem:[%s1 + $0x14] sm:$0xf]
  %v82 = vld [vmem:[%s1 + $0x18] sm:$0xf]
  %v83 = vld [vmem:[%s1 + $0x1c] sm:$0xf]
  %v84 = vld [vmem:[%s1 + $0x20] sm:$0xf]
  %v85 = vld [vmem:[%s1 + $0x24] sm:$0xf]
  %v86 = vld [vmem:[%s1 + $0x28] sm:$0xf]
  %v87 = vld [vmem:[%s1 + $0x2c] sm:$0xf]
  %v88 = vld [vmem:[%s1 + $0x30] sm:$0xf]
  %v89 = vld [vmem:[%s1 + $0x34] sm:$0xf]
  %v90 = vld [vmem:[%s1 + $0x38] sm:$0xf]
  %v91 = vld [vmem:[%s1 + $0x3c] sm:$0xf]
  %v156 = vunpack.c.l.b16 %v12
  %v157 = vunpack.c.l.b16 %v13
  %v158 = vunpack.c.l.b16 %v14
  %v159 = vunpack.c.l.b16 %v15
  %v160 = vunpack.c.l.b16 %v16
  %v161 = vunpack.c.l.b16 %v17
  %v162 = vunpack.c.l.b16 %v18
  %v163 = vunpack.c.l.b16 %v19
  %v164 = vunpack.c.l.b16 %v20
  %v165 = vunpack.c.l.b16 %v21
  %v166 = vunpack.c.l.b16 %v22
  %v167 = vunpack.c.l.b16 %v23
  %v168 = vunpack.c.l.b16 %v24
  %v169 = vunpack.c.l.b16 %v25
  %v170 = vunpack.c.l.b16 %v26
  %v171 = vunpack.c.l.b16 %v27
  %v172 = vunpack.c.l.b16 %v28
  %v173 = vunpack.c.l.b16 %v29
  %v174 = vunpack.c.l.b16 %v30
  %v175 = vunpack.c.l.b16 %v31
  %v176 = vunpack.c.l.b16 %v32
  %v177 = vunpack.c.l.b16 %v33
  %v178 = vunpack.c.l.b16 %v34
  %v179 = vunpack.c.l.b16 %v35
  %v180 = vunpack.c.l.b16 %v36
  %v181 = vunpack.c.l.b16 %v37
  %v182 = vunpack.c.l.b16 %v38
  %v183 = vunpack.c.l.b16 %v39
  %v184 = vunpack.c.l.b16 %v40
  %v185 = vunpack.c.l.b16 %v41
  %v186 = vunpack.c.l.b16 %v42
  %v187 = vunpack.c.l.b16 %v43
  %v188 = vunpack.c.l.b16 %v44
  %v189 = vunpack.c.l.b16 %v45
  %v190 = vunpack.c.l.b16 %v46
  %v191 = vunpack.c.l.b16 %v47
  %v192 = vunpack.c.l.b16 %v48
  %v193 = vunpack.c.l.b16 %v49
  %v194 = vunpack.c.l.b16 %v50
  %v195 = vunpack.c.l.b16 %v51
  %v196 = vunpack.c.l.b16 %v52
  %v197 = vunpack.c.l.b16 %v53
  %v198 = vunpack.c.l.b16 %v54
  %v199 = vunpack.c.l.b16 %v55
  %v200 = vunpack.c.l.b16 %v56
  %v201 = vunpack.c.l.b16 %v57
  %v202 = vunpack.c.l.b16 %v58
  %v203 = vunpack.c.l.b16 %v59
  %v204 = vunpack.c.l.b16 %v60
  %v205 = vunpack.c.l.b16 %v61
  %v206 = vunpack.c.l.b16 %v62
  %v207 = vunpack.c.l.b16 %v63
  %v208 = vunpack.c.l.b16 %v64
  %v209 = vunpack.c.l.b16 %v65
  %v210 = vunpack.c.l.b16 %v66
  %v211 = vunpack.c.l.b16 %v67
  %v212 = vunpack.c.l.b16 %v68
  %v213 = vunpack.c.l.b16 %v69
  %v214 = vunpack.c.l.b16 %v70
  %v215 = vunpack.c.l.b16 %v71
  %v216 = vunpack.c.l.b16 %v72
  %v217 = vunpack.c.l.b16 %v73
  %v218 = vunpack.c.l.b16 %v74
  %v219 = vunpack.c.l.b16 %v75
  %v220 = vpack.c.b16 %v157, %v156
  %v221 = vpack.c.b16 %v159, %v158
  %v222 = vpack.c.b16 %v161, %v160
  %v223 = vpack.c.b16 %v163, %v162
  %v224 = vpack.c.b16 %v165, %v164
  %v225 = vpack.c.b16 %v167, %v166
  %v226 = vpack.c.b16 %v169, %v168
  %v227 = vpack.c.b16 %v171, %v170
  %v228 = vpack.c.b16 %v173, %v172
  %v229 = vpack.c.b16 %v175, %v174
  %v230 = vpack.c.b16 %v177, %v176
  %v231 = vpack.c.b16 %v179, %v178
  %v232 = vpack.c.b16 %v181, %v180
  %v233 = vpack.c.b16 %v183, %v182
  %v234 = vpack.c.b16 %v185, %v184
  %v235 = vpack.c.b16 %v187, %v186
  %v236 = vpack.c.b16 %v189, %v188
  %v237 = vpack.c.b16 %v191, %v190
  %v238 = vpack.c.b16 %v193, %v192
  %v239 = vpack.c.b16 %v195, %v194
  %v240 = vpack.c.b16 %v197, %v196
  %v241 = vpack.c.b16 %v199, %v198
  %v242 = vpack.c.b16 %v201, %v200
  %v243 = vpack.c.b16 %v203, %v202
  %v244 = vpack.c.b16 %v205, %v204
  %v245 = vpack.c.b16 %v207, %v206
  %v246 = vpack.c.b16 %v209, %v208
  %v247 = vpack.c.b16 %v211, %v210
  %v248 = vpack.c.b16 %v213, %v212
  %v249 = vpack.c.b16 %v215, %v214
  %v250 = vpack.c.b16 %v217, %v216
  %v251 = vpack.c.b16 %v219, %v218
  %v300 = vunpack.c.l.b16 %v76
  %v301 = vunpack.c.l.b16 %v77
  %v302 = vunpack.c.l.b16 %v78
  %v303 = vunpack.c.l.b16 %v79
  %v304 = vunpack.c.l.b16 %v80
  %v305 = vunpack.c.l.b16 %v81
  %v306 = vunpack.c.l.b16 %v82
  %v307 = vunpack.c.l.b16 %v83
  %v308 = vunpack.c.l.b16 %v84
  %v309 = vunpack.c.l.b16 %v85
  %v310 = vunpack.c.l.b16 %v86
  %v311 = vunpack.c.l.b16 %v87
  %v312 = vunpack.c.l.b16 %v88
  %v313 = vunpack.c.l.b16 %v89
  %v314 = vunpack.c.l.b16 %v90
  %v315 = vunpack.c.l.b16 %v91
  %v316 = vpack.c.b16 %v301, %v300
  %v317 = vpack.c.b16 %v303, %v302
  %v318 = vpack.c.b16 %v305, %v304
  %v319 = vpack.c.b16 %v307, %v306
  %v320 = vpack.c.b16 %v309, %v308
  %v321 = vpack.c.b16 %v311, %v310
  %v322 = vpack.c.b16 %v313, %v312
  %v323 = vpack.c.b16 %v315, %v314
  %332 = vmatprep.subr.bf16.mxu0 0
  %333 = vmatpush1.bf16.msra.mxu0 %v316
  %334 = vmatprep.subr.bf16.mxu0 0
  %335 = vmatpush1.bf16.msra.mxu0 %v317
  %336 = vmatprep.subr.bf16.mxu0 0
  %337 = vmatpush1.bf16.msra.mxu0 %v318
  %338 = vmatprep.subr.bf16.mxu0 0
  %339 = vmatpush1.bf16.msra.mxu0 %v319
  %340 = vmatprep.subr.bf16.mxu0 0
  %341 = vmatpush1.bf16.msra.mxu0 %v320
  %342 = vmatprep.subr.bf16.mxu0 0
  %343 = vmatpush1.bf16.msra.mxu0 %v321
  %344 = vmatprep.subr.bf16.mxu0 0
  %345 = vmatpush1.bf16.msra.mxu0 %v322
  %346 = vmatprep.subr.bf16.mxu0 0
  %347 = vmatpush1.bf16.msra.mxu0 %v323
  %348 = vmatprep.subr.bf16.mxu0 0
  %349 = vmatpush1.bf16.msra.mxu0 0
  %350 = vmatprep.subr.bf16.mxu0 0
  %351 = vmatpush1.bf16.msra.mxu0 0
  %352 = vmatprep.subr.bf16.mxu0 0
  %353 = vmatpush1.bf16.msra.mxu0 0
  %354 = vmatprep.subr.bf16.mxu0 0
  %355 = vmatpush1.bf16.msra.mxu0 0
  %356 = vmatprep.subr.bf16.mxu0 0
  %357 = vmatpush1.bf16.msra.mxu0 0
  %358 = vmatprep.subr.bf16.mxu0 0
  %359 = vmatpush1.bf16.msra.mxu0 0
  %360 = vmatprep.subr.bf16.mxu0 0
  %361 = vmatpush1.bf16.msra.mxu0 0
  %362 = vmatprep.subr.bf16.mxu0 0
  %363 = vmatpush1.bf16.msra.mxu0 0
  %364 = vmatprep.mubr.bf16.mxu0 0
  %365 = vmatmul.mubr.bf16.gmra.mrb[0].mxu0 %v220
  %v366 = vpop.f32.mrb[0].mxu0
  %v367 = vadd.f32 0.0, %v366
  %v368 = vpop.f32.mrb[0].mxu0
  %v369 = vpop.f32.mrb[0].mxu0
  %v370 = vadd.f32 0.0, %v369
  %v371 = vpop.f32.mrb[0].mxu0
  %372 = vmatprep.mubr.bf16.mxu0 0
  %373 = vmatmul.mubr.bf16.gmra.mrb[0].mxu0 %v221
  %v374 = vpop.f32.mrb[0].mxu0
  %v375 = vadd.f32 0.0, %v374
  %v376 = vpop.f32.mrb[0].mxu0
  %v377 = vpop.f32.mrb[0].mxu0
  %v378 = vadd.f32 0.0, %v377
  %v379 = vpop.f32.mrb[0].mxu0
  %380 = vmatprep.mubr.bf16.mxu0 0
  %381 = vmatmul.mubr.bf16.gmra.mrb[0].mxu0 %v222
  %v382 = vpop.f32.mrb[0].mxu0
  %v383 = vadd.f32 0.0, %v382
  %v384 = vpop.f32.mrb[0].mxu0
  %v385 = vpop.f32.mrb[0].mxu0
  %v386 = vadd.f32 0.0, %v385
  %v387 = vpop.f32.mrb[0].mxu0
  %388 = vmatprep.mubr.bf16.mxu0 0
  %389 = vmatmul.mubr.bf16.gmra.mrb[0].mxu0 %v223
  %v390 = vpop.f32.mrb[0].mxu0
  %v391 = vadd.f32 0.0, %v390
  %v392 = vpop.f32.mrb[0].mxu0
  %v393 = vpop.f32.mrb[0].mxu0
  %v394 = vadd.f32 0.0, %v393
  %v395 = vpop.f32.mrb[0].mxu0
  %396 = vmatprep.mubr.bf16.mxu0 0
  %397 = vmatmul.mubr.bf16.gmra.mrb[0].mxu0 %v224
  %v398 = vpop.f32.mrb[0].mxu0
  %v399 = vadd.f32 0.0, %v398
  %v400 = vpop.f32.mrb[0].mxu0
  %v401 = vpop.f32.mrb[0].mxu0
  %v402 = vadd.f32 0.0, %v401
  %v403 = vpop.f32.mrb[0].mxu0
  %404 = vmatprep.mubr.bf16.mxu0 0
  %405 = vmatmul.mubr.bf16.gmra.mrb[0].mxu0 %v225
  %v406 = vpop.f32.mrb[0].mxu0
  %v407 = vadd.f32 0.0, %v406
  %v408 = vpop.f32.mrb[0].mxu0
  %v409 = vpop.f32.mrb[0].mxu0
  %v410 = vadd.f32 0.0, %v409
  %v411 = vpop.f32.mrb[0].mxu0
  %412 = vmatprep.mubr.bf16.mxu0 0
  %413 = vmatmul.mubr.bf16.gmra.mrb[0].mxu0 %v226
  %v414 = vpop.f32.mrb[0].mxu0
  %v415 = vadd.f32 0.0, %v414
  %v416 = vpop.f32.mrb[0].mxu0
  %v417 = vpop.f32.mrb[0].mxu0
  %v418 = vadd.f32 0.0, %v417
  %v419 = vpop.f32.mrb[0].mxu0
  %420 = vmatprep.mubr.bf16.mxu0 0
  %421 = vmatmul.mubr.bf16.gmra.mrb[0].mxu0 %v227
  %v422 = vpop.f32.mrb[0].mxu0
  %v423 = vadd.f32 0.0, %v422
  %v424 = vpop.f32.mrb[0].mxu0
  %v425 = vpop.f32.mrb[0].mxu0
  %v426 = vadd.f32 0.0, %v425
  %v427 = vpop.f32.mrb[0].mxu0
  %428 = vmatprep.mubr.bf16.mxu0 0
  %429 = vmatmul.mubr.bf16.gmra.mrb[0].mxu0 %v228
  %v430 = vpop.f32.mrb[0].mxu0
  %v431 = vadd.f32 0.0, %v430
  %v432 = vpop.f32.mrb[0].mxu0
  %v433 = vpop.f32.mrb[0].mxu0
  %v434 = vadd.f32 0.0, %v433
  %v435 = vpop.f32.mrb[0].mxu0
  %436 = vmatprep.mubr.bf16.mxu0 0
  %437 = vmatmul.mubr.bf16.gmra.mrb[0].mxu0 %v229
  %v438 = vpop.f32.mrb[0].mxu0
  %v439 = vadd.f32 0.0, %v438
  %v440 = vpop.f32.mrb[0].mxu0
  %v441 = vpop.f32.mrb[0].mxu0
  %v442 = vadd.f32 0.0, %v441
  %v443 = vpop.f32.mrb[0].mxu0
  %444 = vmatprep.mubr.bf16.mxu0 0
  %445 = vmatmul.mubr.bf16.gmra.mrb[0].mxu0 %v230
  %v446 = vpop.f32.mrb[0].mxu0
  %v447 = vadd.f32 0.0, %v446
  %v448 = vpop.f32.mrb[0].mxu0
  %v449 = vpop.f32.mrb[0].mxu0
  %v450 = vadd.f32 0.0, %v449
  %v451 = vpop.f32.mrb[0].mxu0
  %452 = vmatprep.mubr.bf16.mxu0 0
  %453 = vmatmul.mubr.bf16.gmra.mrb[0].mxu0 %v231
  %v454 = vpop.f32.mrb[0].mxu0
  %v455 = vadd.f32 0.0, %v454
  %v456 = vpop.f32.mrb[0].mxu0
  %v457 = vpop.f32.mrb[0].mxu0
  %v458 = vadd.f32 0.0, %v457
  %v459 = vpop.f32.mrb[0].mxu0
  %460 = vmatprep.mubr.bf16.mxu0 0
  %461 = vmatmul.mubr.bf16.gmra.mrb[0].mxu0 %v232
  %v462 = vpop.f32.mrb[0].mxu0
  %v463 = vadd.f32 0.0, %v462
  %v464 = vpop.f32.mrb[0].mxu0
  %v465 = vpop.f32.mrb[0].mxu0
  %v466 = vadd.f32 0.0, %v465
  %v467 = vpop.f32.mrb[0].mxu0
  %468 = vmatprep.mubr.bf16.mxu0 0
  %469 = vmatmul.mubr.bf16.gmra.mrb[0].mxu0 %v233
  %v470 = vpop.f32.mrb[0].mxu0
  %v471 = vadd.f32 0.0, %v470
  %v472 = vpop.f32.mrb[0].mxu0
  %v473 = vpop.f32.mrb[0].mxu0
  %v474 = vadd.f32 0.0, %v473
  %v475 = vpop.f32.mrb[0].mxu0
  %476 = vmatprep.mubr.bf16.mxu0 0
  %477 = vmatmul.mubr.bf16.gmra.mrb[0].mxu0 %v234
  %v478 = vpop.f32.mrb[0].mxu0
  %v479 = vadd.f32 0.0, %v478
  %v480 = vpop.f32.mrb[0].mxu0
  %v481 = vpop.f32.mrb[0].mxu0
  %v482 = vadd.f32 0.0, %v481
  %v483 = vpop.f32.mrb[0].mxu0
  %484 = vmatprep.mubr.bf16.mxu0 0
  %485 = vmatmul.mubr.bf16.gmra.mrb[0].mxu0 %v235
  %v486 = vpop.f32.mrb[0].mxu0
  %v487 = vadd.f32 0.0, %v486
  %v488 = vpop.f32.mrb[0].mxu0
  %v489 = vpop.f32.mrb[0].mxu0
  %v490 = vadd.f32 0.0, %v489
  %v491 = vpop.f32.mrb[0].mxu0
  %492 = vmatprep.mubr.bf16.mxu0 0
  %493 = vmatmul.mubr.bf16.gmra.mrb[0].mxu0 %v236
  %v494 = vpop.f32.mrb[0].mxu0
  %v495 = vadd.f32 0.0, %v494
  %v496 = vpop.f32.mrb[0].mxu0
  %v497 = vpop.f32.mrb[0].mxu0
  %v498 = vadd.f32 0.0, %v497
  %v499 = vpop.f32.mrb[0].mxu0
  %500 = vmatprep.mubr.bf16.mxu0 0
  %501 = vmatmul.mubr.bf16.gmra.mrb[0].mxu0 %v237
  %v502 = vpop.f32.mrb[0].mxu0
  %v503 = vadd.f32 0.0, %v502
  %v504 = vpop.f32.mrb[0].mxu0
  %v505 = vpop.f32.mrb[0].mxu0
  %v506 = vadd.f32 0.0, %v505
  %v507 = vpop.f32.mrb[0].mxu0
  %508 = vmatprep.mubr.bf16.mxu0 0
  %509 = vmatmul.mubr.bf16.gmra.mrb[0].mxu0 %v238
  %v510 = vpop.f32.mrb[0].mxu0
  %v511 = vadd.f32 0.0, %v510
  %v512 = vpop.f32.mrb[0].mxu0
  %v513 = vpop.f32.mrb[0].mxu0
  %v514 = vadd.f32 0.0, %v513
  %v515 = vpop.f32.mrb[0].mxu0
  %516 = vmatprep.mubr.bf16.mxu0 0
  %517 = vmatmul.mubr.bf16.gmra.mrb[0].mxu0 %v239
  %v518 = vpop.f32.mrb[0].mxu0
  %v519 = vadd.f32 0.0, %v518
  %v520 = vpop.f32.mrb[0].mxu0
  %v521 = vpop.f32.mrb[0].mxu0
  %v522 = vadd.f32 0.0, %v521
  %v523 = vpop.f32.mrb[0].mxu0
  %524 = vmatprep.mubr.bf16.mxu0 0
  %525 = vmatmul.mubr.bf16.gmra.mrb[0].mxu0 %v240
  %v526 = vpop.f32.mrb[0].mxu0
  %v527 = vadd.f32 0.0, %v526
  %v528 = vpop.f32.mrb[0].mxu0
  %v529 = vpop.f32.mrb[0].mxu0
  %v530 = vadd.f32 0.0, %v529
  %v531 = vpop.f32.mrb[0].mxu0
  %532 = vmatprep.mubr.bf16.mxu0 0
  %533 = vmatmul.mubr.bf16.gmra.mrb[0].mxu0 %v241
  %v534 = vpop.f32.mrb[0].mxu0
  %v535 = vadd.f32 0.0, %v534
  %v536 = vpop.f32.mrb[0].mxu0
  %v537 = vpop.f32.mrb[0].mxu0
  %v538 = vadd.f32 0.0, %v537
  %v539 = vpop.f32.mrb[0].mxu0
  %540 = vmatprep.mubr.bf16.mxu0 0
  %541 = vmatmul.mubr.bf16.gmra.mrb[0].mxu0 %v242
  %v542 = vpop.f32.mrb[0].mxu0
  %v543 = vadd.f32 0.0, %v542
  %v544 = vpop.f32.mrb[0].mxu0
  %v545 = vpop.f32.mrb[0].mxu0
  %v546 = vadd.f32 0.0, %v545
  %v547 = vpop.f32.mrb[0].mxu0
  %548 = vmatprep.mubr.bf16.mxu0 0
  %549 = vmatmul.mubr.bf16.gmra.mrb[0].mxu0 %v243
  %v550 = vpop.f32.mrb[0].mxu0
  %v551 = vadd.f32 0.0, %v550
  %v552 = vpop.f32.mrb[0].mxu0
  %v553 = vpop.f32.mrb[0].mxu0
  %v554 = vadd.f32 0.0, %v553
  %v555 = vpop.f32.mrb[0].mxu0
  %556 = vmatprep.mubr.bf16.mxu0 0
  %557 = vmatmul.mubr.bf16.gmra.mrb[0].mxu0 %v244
  %v558 = vpop.f32.mrb[0].mxu0
  %v559 = vadd.f32 0.0, %v558
  %v560 = vpop.f32.mrb[0].mxu0
  %v561 = vpop.f32.mrb[0].mxu0
  %v562 = vadd.f32 0.0, %v561
  %v563 = vpop.f32.mrb[0].mxu0
  %564 = vmatprep.mubr.bf16.mxu0 0
  %565 = vmatmul.mubr.bf16.gmra.mrb[0].mxu0 %v245
  %v566 = vpop.f32.mrb[0].mxu0
  %v567 = vadd.f32 0.0, %v566
  %v568 = vpop.f32.mrb[0].mxu0
  %v569 = vpop.f32.mrb[0].mxu0
  %v570 = vadd.f32 0.0, %v569
  %v571 = vpop.f32.mrb[0].mxu0
  %572 = vmatprep.mubr.bf16.mxu0 0
  %573 = vmatmul.mubr.bf16.gmra.mrb[0].mxu0 %v246
  %v574 = vpop.f32.mrb[0].mxu0
  %v575 = vadd.f32 0.0, %v574
  %v576 = vpop.f32.mrb[0].mxu0
  %v577 = vpop.f32.mrb[0].mxu0
  %v578 = vadd.f32 0.0, %v577
  %v579 = vpop.f32.mrb[0].mxu0
  %580 = vmatprep.mubr.bf16.mxu0 0
  %581 = vmatmul.mubr.bf16.gmra.mrb[0].mxu0 %v247
  %v582 = vpop.f32.mrb[0].mxu0
  %v583 = vadd.f32 0.0, %v582
  %v584 = vpop.f32.mrb[0].mxu0
  %v585 = vpop.f32.mrb[0].mxu0
  %v586 = vadd.f32 0.0, %v585
  %v587 = vpop.f32.mrb[0].mxu0
  %588 = vmatprep.mubr.bf16.mxu0 0
  %589 = vmatmul.mubr.bf16.gmra.mrb[0].mxu0 %v248
  %v590 = vpop.f32.mrb[0].mxu0
  %v591 = vadd.f32 0.0, %v590
  %v592 = vpop.f32.mrb[0].mxu0
  %v593 = vpop.f32.mrb[0].mxu0
  %v594 = vadd.f32 0.0, %v593
  %v595 = vpop.f32.mrb[0].mxu0
  %596 = vmatprep.mubr.bf16.mxu0 0
  %597 = vmatmul.mubr.bf16.gmra.mrb[0].mxu0 %v249
  %v598 = vpop.f32.mrb[0].mxu0
  %v599 = vadd.f32 0.0, %v598
  %v600 = vpop.f32.mrb[0].mxu0
  %v601 = vpop.f32.mrb[0].mxu0
  %v602 = vadd.f32 0.0, %v601
  %v603 = vpop.f32.mrb[0].mxu0
  %604 = vmatprep.mubr.bf16.mxu0 0
  %605 = vmatmul.mubr.bf16.gmra.mrb[0].mxu0 %v250
  %v606 = vpop.f32.mrb[0].mxu0
  %v607 = vadd.f32 0.0, %v606
  %v608 = vpop.f32.mrb[0].mxu0
  %v609 = vpop.f32.mrb[0].mxu0
  %v610 = vadd.f32 0.0, %v609
  %v611 = vpop.f32.mrb[0].mxu0
  %612 = vmatprep.mubr.bf16.mxu0 0
  %613 = vmatmul.mubr.bf16.gmra.mrb[0].mxu0 %v251
  %v614 = vpop.f32.mrb[0].mxu0
  %v615 = vadd.f32 0.0, %v614
  %v616 = vpop.f32.mrb[0].mxu0
  %v617 = vpop.f32.mrb[0].mxu0
  %v618 = vadd.f32 0.0, %v617
  %v619 = vpop.f32.mrb[0].mxu0
  %620 = vdwg.mxu0
  %vm621 = vcmp.ge.f32.partialorder %v367, 0.0
  %vm622 = vcmp.ge.f32.partialorder %v370, 0.0
  %vm623 = vcmp.ge.f32.partialorder %v375, 0.0
  %vm624 = vcmp.ge.f32.partialorder %v378, 0.0
  %vm625 = vcmp.ge.f32.partialorder %v383, 0.0
  %vm626 = vcmp.ge.f32.partialorder %v386, 0.0
  %vm627 = vcmp.ge.f32.partialorder %v391, 0.0
  %vm628 = vcmp.ge.f32.partialorder %v394, 0.0
  %vm629 = vcmp.ge.f32.partialorder %v399, 0.0
  %vm630 = vcmp.ge.f32.partialorder %v402, 0.0
  %vm631 = vcmp.ge.f32.partialorder %v407, 0.0
  %vm632 = vcmp.ge.f32.partialorder %v410, 0.0
  %vm633 = vcmp.ge.f32.partialorder %v415, 0.0
  %vm634 = vcmp.ge.f32.partialorder %v418, 0.0
  %vm635 = vcmp.ge.f32.partialorder %v423, 0.0
  %vm636 = vcmp.ge.f32.partialorder %v426, 0.0
  %vm637 = vcmp.ge.f32.partialorder %v431, 0.0
  %vm638 = vcmp.ge.f32.partialorder %v434, 0.0
  %vm639 = vcmp.ge.f32.partialorder %v439, 0.0
  %vm640 = vcmp.ge.f32.partialorder %v442, 0.0
  %vm641 = vcmp.ge.f32.partialorder %v447, 0.0
  %vm642 = vcmp.ge.f32.partialorder %v450, 0.0
  %vm643 = vcmp.ge.f32.partialorder %v455, 0.0
  %vm644 = vcmp.ge.f32.partialorder %v458, 0.0
  %vm645 = vcmp.ge.f32.partialorder %v463, 0.0
  %vm646 = vcmp.ge.f32.partialorder %v466, 0.0
  %vm647 = vcmp.ge.f32.partialorder %v471, 0.0
  %vm648 = vcmp.ge.f32.partialorder %v474, 0.0
  %vm649 = vcmp.ge.f32.partialorder %v479, 0.0
  %vm650 = vcmp.ge.f32.partialorder %v482, 0.0
  %vm651 = vcmp.ge.f32.partialorder %v487, 0.0
  %vm652 = vcmp.ge.f32.partialorder %v490, 0.0
  %vm653 = vcmp.ge.f32.partialorder %v495, 0.0
  %vm654 = vcmp.ge.f32.partialorder %v498, 0.0
  %vm655 = vcmp.ge.f32.partialorder %v503, 0.0
  %vm656 = vcmp.ge.f32.partialorder %v506, 0.0
  %vm657 = vcmp.ge.f32.partialorder %v511, 0.0
  %vm658 = vcmp.ge.f32.partialorder %v514, 0.0
  %vm659 = vcmp.ge.f32.partialorder %v519, 0.0
  %vm660 = vcmp.ge.f32.partialorder %v522, 0.0
  %vm661 = vcmp.ge.f32.partialorder %v527, 0.0
  %vm662 = vcmp.ge.f32.partialorder %v530, 0.0
  %vm663 = vcmp.ge.f32.partialorder %v535, 0.0
  %vm664 = vcmp.ge.f32.partialorder %v538, 0.0
  %vm665 = vcmp.ge.f32.partialorder %v543, 0.0
  %vm666 = vcmp.ge.f32.partialorder %v546, 0.0
  %vm667 = vcmp.ge.f32.partialorder %v551, 0.0
  %vm668 = vcmp.ge.f32.partialorder %v554, 0.0
  %vm669 = vcmp.ge.f32.partialorder %v559, 0.0
  %vm670 = vcmp.ge.f32.partialorder %v562, 0.0
  %vm671 = vcmp.ge.f32.partialorder %v567, 0.0
  %vm672 = vcmp.ge.f32.partialorder %v570, 0.0
  %vm673 = vcmp.ge.f32.partialorder %v575, 0.0
  %vm674 = vcmp.ge.f32.partialorder %v578, 0.0
  %vm675 = vcmp.ge.f32.partialorder %v583, 0.0
  %vm676 = vcmp.ge.f32.partialorder %v586, 0.0
  %vm677 = vcmp.ge.f32.partialorder %v591, 0.0
  %vm678 = vcmp.ge.f32.partialorder %v594, 0.0
  %vm679 = vcmp.ge.f32.partialorder %v599, 0.0
  %vm680 = vcmp.ge.f32.partialorder %v602, 0.0
  %vm681 = vcmp.ge.f32.partialorder %v607, 0.0
  %vm682 = vcmp.ge.f32.partialorder %v610, 0.0
  %vm683 = vcmp.ge.f32.partialorder %v615, 0.0
  %vm684 = vcmp.ge.f32.partialorder %v618, 0.0
  %v685 = vmul.f32 %v367, 0.01
  %v686 = vmul.f32 %v370, 0.01
  %v687 = vmul.f32 %v375, 0.01
  %v688 = vmul.f32 %v378, 0.01
  %v689 = vmul.f32 %v383, 0.01
  %v690 = vmul.f32 %v386, 0.01
  %v691 = vmul.f32 %v391, 0.01
  %v692 = vmul.f32 %v394, 0.01
  %v693 = vmul.f32 %v399, 0.01
  %v694 = vmul.f32 %v402, 0.01
  %v695 = vmul.f32 %v407, 0.01
  %v696 = vmul.f32 %v410, 0.01
  %v697 = vmul.f32 %v415, 0.01
  %v698 = vmul.f32 %v418, 0.01
  %v699 = vmul.f32 %v423, 0.01
  %v700 = vmul.f32 %v426, 0.01
  %v701 = vmul.f32 %v431, 0.01
  %v702 = vmul.f32 %v434, 0.01
  %v703 = vmul.f32 %v439, 0.01
  %v704 = vmul.f32 %v442, 0.01
  %v705 = vmul.f32 %v447, 0.01
  %v706 = vmul.f32 %v450, 0.01
  %v707 = vmul.f32 %v455, 0.01
  %v708 = vmul.f32 %v458, 0.01
  %v709 = vmul.f32 %v463, 0.01
  %v710 = vmul.f32 %v466, 0.01
  %v711 = vmul.f32 %v471, 0.01
  %v712 = vmul.f32 %v474, 0.01
  %v713 = vmul.f32 %v479, 0.01
  %v714 = vmul.f32 %v482, 0.01
  %v715 = vmul.f32 %v487, 0.01
  %v716 = vmul.f32 %v490, 0.01
  %v717 = vmul.f32 %v495, 0.01
  %v718 = vmul.f32 %v498, 0.01
  %v719 = vmul.f32 %v503, 0.01
  %v720 = vmul.f32 %v506, 0.01
  %v721 = vmul.f32 %v511, 0.01
  %v722 = vmul.f32 %v514, 0.01
  %v723 = vmul.f32 %v519, 0.01
  %v724 = vmul.f32 %v522, 0.01
  %v725 = vmul.f32 %v527, 0.01
  %v726 = vmul.f32 %v530, 0.01
  %v727 = vmul.f32 %v535, 0.01
  %v728 = vmul.f32 %v538, 0.01
  %v729 = vmul.f32 %v543, 0.01
  %v730 = vmul.f32 %v546, 0.01
  %v731 = vmul.f32 %v551, 0.01
  %v732 = vmul.f32 %v554, 0.01
  %v733 = vmul.f32 %v559, 0.01
  %v734 = vmul.f32 %v562, 0.01
  %v735 = vmul.f32 %v567, 0.01
  %v736 = vmul.f32 %v570, 0.01
  %v737 = vmul.f32 %v575, 0.01
  %v738 = vmul.f32 %v578, 0.01
  %v739 = vmul.f32 %v583, 0.01
  %v740 = vmul.f32 %v586, 0.01
  %v741 = vmul.f32 %v591, 0.01
  %v742 = vmul.f32 %v594, 0.01
  %v743 = vmul.f32 %v599, 0.01
  %v744 = vmul.f32 %v602, 0.01
  %v745 = vmul.f32 %v607, 0.01
  %v746 = vmul.f32 %v610, 0.01
  %v747 = vmul.f32 %v615, 0.01
  %v748 = vmul.f32 %v618, 0.01
  %v749 = vsel %vm621, %v367, %v685
  %v750 = vsel %vm622, %v370, %v686
  %v751 = vsel %vm623, %v375, %v687
  %v752 = vsel %vm624, %v378, %v688
  %v753 = vsel %vm625, %v383, %v689
  %v754 = vsel %vm626, %v386, %v690
  %v755 = vsel %vm627, %v391, %v691
  %v756 = vsel %vm628, %v394, %v692
  %v757 = vsel %vm629, %v399, %v693
  %v758 = vsel %vm630, %v402, %v694
  %v759 = vsel %vm631, %v407, %v695
  %v760 = vsel %vm632, %v410, %v696
  %v761 = vsel %vm633, %v415, %v697
  %v762 = vsel %vm634, %v418, %v698
  %v763 = vsel %vm635, %v423, %v699
  %v764 = vsel %vm636, %v426, %v700
  %v765 = vsel %vm637, %v431, %v701
  %v766 = vsel %vm638, %v434, %v702
  %v767 = vsel %vm639, %v439, %v703
  %v768 = vsel %vm640, %v442, %v704
  %v769 = vsel %vm641, %v447, %v705
  %v770 = vsel %vm642, %v450, %v706
  %v771 = vsel %vm643, %v455, %v707
  %v772 = vsel %vm644, %v458, %v708
  %v773 = vsel %vm645, %v463, %v709
  %v774 = vsel %vm646, %v466, %v710
  %v775 = vsel %vm647, %v471, %v711
  %v776 = vsel %vm648, %v474, %v712
  %v777 = vsel %vm649, %v479, %v713
  %v778 = vsel %vm650, %v482, %v714
  %v779 = vsel %vm651, %v487, %v715
  %v780 = vsel %vm652, %v490, %v716
  %v781 = vsel %vm653, %v495, %v717
  %v782 = vsel %vm654, %v498, %v718
  %v783 = vsel %vm655, %v503, %v719
  %v784 = vsel %vm656, %v506, %v720
  %v785 = vsel %vm657, %v511, %v721
  %v786 = vsel %vm658, %v514, %v722
  %v787 = vsel %vm659, %v519, %v723
  %v788 = vsel %vm660, %v522, %v724
  %v789 = vsel %vm661, %v527, %v725
  %v790 = vsel %vm662, %v530, %v726
  %v791 = vsel %vm663, %v535, %v727
  %v792 = vsel %vm664, %v538, %v728
  %v793 = vsel %vm665, %v543, %v729
  %v794 = vsel %vm666, %v546, %v730
  %v795 = vsel %vm667, %v551, %v731
  %v796 = vsel %vm668, %v554, %v732
  %v797 = vsel %vm669, %v559, %v733
  %v798 = vsel %vm670, %v562, %v734
  %v799 = vsel %vm671, %v567, %v735
  %v800 = vsel %vm672, %v570, %v736
  %v801 = vsel %vm673, %v575, %v737
  %v802 = vsel %vm674, %v578, %v738
  %v803 = vsel %vm675, %v583, %v739
  %v804 = vsel %vm676, %v586, %v740
  %v805 = vsel %vm677, %v591, %v741
  %v806 = vsel %vm678, %v594, %v742
  %v807 = vsel %vm679, %v599, %v743
  %v808 = vsel %vm680, %v602, %v744
  %v809 = vsel %vm681, %v607, %v745
  %v810 = vsel %vm682, %v610, %v746
  %v811 = vsel %vm683, %v615, %v747
  %v812 = vsel %vm684, %v618, %v748
  %vm813 = vcmask 64512
  %814 = vst.msk [vmem:[%s2] sm:$0xff] %vm813, %v749
  %815 = vst.msk [vmem:[%s2 + $0x8] sm:$0xff] %vm813, %v750
  %816 = vst.msk [vmem:[%s2 + $0x10] sm:$0xff] %vm813, %v751
  %817 = vst.msk [vmem:[%s2 + $0x18] sm:$0xff] %vm813, %v752
  %818 = vst.msk [vmem:[%s2 + $0x20] sm:$0xff] %vm813, %v753
  %819 = vst.msk [vmem:[%s2 + $0x28] sm:$0xff] %vm813, %v754
  %820 = vst.msk [vmem:[%s2 + $0x30] sm:$0xff] %vm813, %v755
  %821 = vst.msk [vmem:[%s2 + $0x38] sm:$0xff] %vm813, %v756
  %822 = vst.msk [vmem:[%s2 + $0x40] sm:$0xff] %vm813, %v757
  %823 = vst.msk [vmem:[%s2 + $0x48] sm:$0xff] %vm813, %v758
  %824 = vst.msk [vmem:[%s2 + $0x50] sm:$0xff] %vm813, %v759
  %825 = vst.msk [vmem:[%s2 + $0x58] sm:$0xff] %vm813, %v760
  %826 = vst.msk [vmem:[%s2 + $0x60] sm:$0xff] %vm813, %v761
  %827 = vst.msk [vmem:[%s2 + $0x68] sm:$0xff] %vm813, %v762
  %828 = vst.msk [vmem:[%s2 + $0x70] sm:$0xff] %vm813, %v763
  %829 = vst.msk [vmem:[%s2 + $0x78] sm:$0xff] %vm813, %v764
  %830 = vst.msk [vmem:[%s2 + $0x80] sm:$0xff] %vm813, %v765
  %831 = vst.msk [vmem:[%s2 + $0x88] sm:$0xff] %vm813, %v766
  %832 = vst.msk [vmem:[%s2 + $0x90] sm:$0xff] %vm813, %v767
  %833 = vst.msk [vmem:[%s2 + $0x98] sm:$0xff] %vm813, %v768
  %834 = vst.msk [vmem:[%s2 + $0xa0] sm:$0xff] %vm813, %v769
  %835 = vst.msk [vmem:[%s2 + $0xa8] sm:$0xff] %vm813, %v770
  %836 = vst.msk [vmem:[%s2 + $0xb0] sm:$0xff] %vm813, %v771
  %837 = vst.msk [vmem:[%s2 + $0xb8] sm:$0xff] %vm813, %v772
  %838 = vst.msk [vmem:[%s2 + $0xc0] sm:$0xff] %vm813, %v773
  %839 = vst.msk [vmem:[%s2 + $0xc8] sm:$0xff] %vm813, %v774
  %840 = vst.msk [vmem:[%s2 + $0xd0] sm:$0xff] %vm813, %v775
  %841 = vst.msk [vmem:[%s2 + $0xd8] sm:$0xff] %vm813, %v776
  %842 = vst.msk [vmem:[%s2 + $0xe0] sm:$0xff] %vm813, %v777
  %843 = vst.msk [vmem:[%s2 + $0xe8] sm:$0xff] %vm813, %v778
  %844 = vst.msk [vmem:[%s2 + $0xf0] sm:$0xff] %vm813, %v779
  %845 = vst.msk [vmem:[%s2 + $0xf8] sm:$0xff] %vm813, %v780
  %846 = vst.msk [vmem:[%s2 + $0x100] sm:$0xff] %vm813, %v781
  %847 = vst.msk [vmem:[%s2 + $0x108] sm:$0xff] %vm813, %v782
  %848 = vst.msk [vmem:[%s2 + $0x110] sm:$0xff] %vm813, %v783
  %849 = vst.msk [vmem:[%s2 + $0x118] sm:$0xff] %vm813, %v784
  %850 = vst.msk [vmem:[%s2 + $0x120] sm:$0xff] %vm813, %v785
  %851 = vst.msk [vmem:[%s2 + $0x128] sm:$0xff] %vm813, %v786
  %852 = vst.msk [vmem:[%s2 + $0x130] sm:$0xff] %vm813, %v787
  %853 = vst.msk [vmem:[%s2 + $0x138] sm:$0xff] %vm813, %v788
  %854 = vst.msk [vmem:[%s2 + $0x140] sm:$0xff] %vm813, %v789
  %855 = vst.msk [vmem:[%s2 + $0x148] sm:$0xff] %vm813, %v790
  %856 = vst.msk [vmem:[%s2 + $0x150] sm:$0xff] %vm813, %v791
  %857 = vst.msk [vmem:[%s2 + $0x158] sm:$0xff] %vm813, %v792
  %858 = vst.msk [vmem:[%s2 + $0x160] sm:$0xff] %vm813, %v793
  %859 = vst.msk [vmem:[%s2 + $0x168] sm:$0xff] %vm813, %v794
  %860 = vst.msk [vmem:[%s2 + $0x170] sm:$0xff] %vm813, %v795
  %861 = vst.msk [vmem:[%s2 + $0x178] sm:$0xff] %vm813, %v796
  %862 = vst.msk [vmem:[%s2 + $0x180] sm:$0xff] %vm813, %v797
  %863 = vst.msk [vmem:[%s2 + $0x188] sm:$0xff] %vm813, %v798
  %864 = vst.msk [vmem:[%s2 + $0x190] sm:$0xff] %vm813, %v799
  %865 = vst.msk [vmem:[%s2 + $0x198] sm:$0xff] %vm813, %v800
  %866 = vst.msk [vmem:[%s2 + $0x1a0] sm:$0xff] %vm813, %v801
  %867 = vst.msk [vmem:[%s2 + $0x1a8] sm:$0xff] %vm813, %v802
  %868 = vst.msk [vmem:[%s2 + $0x1b0] sm:$0xff] %vm813, %v803
  %869 = vst.msk [vmem:[%s2 + $0x1b8] sm:$0xff] %vm813, %v804
  %870 = vst.msk [vmem:[%s2 + $0x1c0] sm:$0xff] %vm813, %v805
  %871 = vst.msk [vmem:[%s2 + $0x1c8] sm:$0xff] %vm813, %v806
  %872 = vst.msk [vmem:[%s2 + $0x1d0] sm:$0xff] %vm813, %v807
  %873 = vst.msk [vmem:[%s2 + $0x1d8] sm:$0xff] %vm813, %v808
  %874 = vst.msk [vmem:[%s2 + $0x1e0] sm:$0xff] %vm813, %v809
  %875 = vst.msk [vmem:[%s2 + $0x1e8] sm:$0xff] %vm813, %v810
  %876 = vst.msk [vmem:[%s2 + $0x1f0] sm:$0xff] %vm813, %v811
  %877 = vst.msk [vmem:[%s2 + $0x1f8] sm:$0xff] %vm813, %v812
  // Predicated region
  $region10: #{a_call__.6} parent=0 // pred_check
    _
  $region11: #{a_call__.6} parent=0 // pred_check_branch
    %879 = sbr.rel (0) target = $region13
  $region12: #{a_call__.6} parent=0 // pred_region
    _
  $region13: #{a_call__.6} parent=0 // pred_fallthru
    _
  // Predicated region
  $region14: #{a_call__.6} parent=0 // pred_check
    _
  $region15: #{a_call__.6} parent=0 // pred_check_branch
    %881 = sbr.rel (0) target = $region17
  $region16: #{a_call__.6} parent=0 // pred_region
    _
  $region17: #{a_call__.6} parent=0 // pred_fallthru
    _

// kernel: a_call__.7
$region0: #{a_call__.7}
  #allocation0 [shape = 'u32[]', space=smem, size = 0x4, offset = 0x4, fixed_abs, tag = 'smem constant byte address 0x4 - core index']
  #allocation1 [shape = 'u32[144,128]{1,0:T(1,128)}', space=vmem, size = 0x12000, scoped, tag = 'internal scratch']
  %s0 = inlined_call_operand.vmem [shape: bf16[128,128], index: 0, kind: input, shape index: {}]
  %s1 = inlined_call_operand.vmem [shape: bf16[128,16], index: 1, kind: input, shape index: {}]
  %s2 = inlined_call_operand.vmem [shape: f32[128,16], index: 2, kind: output, shape index: {0}]
  %s3 = inlined_call_operand.vmem [shape: f32[2,16], index: 3, kind: output, shape index: {1}]
  %4 = xla_tuple %s2, %s3
  %s5 = sld [smem:[#allocation0]]
  $region30: #{a_call__.7} parent=0
    _
  %s7 = ssub.s32 1, %s5
  %s8 = scalar_select 0, %s7, %s5
  // Predicated region
  $region2: #{a_call__.7} parent=0 // pred_check
    _
  $region3: #{a_call__.7} parent=0 // pred_check_branch
    %10 = sbr.rel (0) target = $region5
  $region4: #{a_call__.7} parent=0 // pred_region
    _
  $region5: #{a_call__.7} parent=0 // pred_fallthru
    _
  // Predicated region
  $region6: #{a_call__.7} parent=0 // pred_check
    _
  $region7: #{a_call__.7} parent=0 // pred_check_branch
    %12 = sbr.rel (0) target = $region9
  $region8: #{a_call__.7} parent=0 // pred_region
    _
  $region9: #{a_call__.7} parent=0 // pred_fallthru
    _
  %v14 = vld [vmem:[%s0] sm:$0xf]
  %v15 = vld [vmem:[%s0 + $0x4] sm:$0xf]
  %v16 = vld [vmem:[%s0 + $0x8] sm:$0xf]
  %v17 = vld [vmem:[%s0 + $0xc] sm:$0xf]
  %v18 = vld [vmem:[%s0 + $0x10] sm:$0xf]
  %v19 = vld [vmem:[%s0 + $0x14] sm:$0xf]
  %v20 = vld [vmem:[%s0 + $0x18] sm:$0xf]
  %v21 = vld [vmem:[%s0 + $0x1c] sm:$0xf]
  %v22 = vld [vmem:[%s0 + $0x20] sm:$0xf]
  %v23 = vld [vmem:[%s0 + $0x24] sm:$0xf]
  %v24 = vld [vmem:[%s0 + $0x28] sm:$0xf]
  %v25 = vld [vmem:[%s0 + $0x2c] sm:$0xf]
  %v26 = vld [vmem:[%s0 + $0x30] sm:$0xf]
  %v27 = vld [vmem:[%s0 + $0x34] sm:$0xf]
  %v28 = vld [vmem:[%s0 + $0x38] sm:$0xf]
  %v29 = vld [vmem:[%s0 + $0x3c] sm:$0xf]
  %v30 = vld [vmem:[%s1] sm:$0xf]
  %v31 = vld [vmem:[%s1 + $0x4] sm:$0xf]
  %v32 = vld [vmem:[%s1 + $0x8] sm:$0xf]
  %v33 = vld [vmem:[%s1 + $0xc] sm:$0xf]
  %v34 = vld [vmem:[%s1 + $0x10] sm:$0xf]
  %v35 = vld [vmem:[%s1 + $0x14] sm:$0xf]
  %v36 = vld [vmem:[%s1 + $0x18] sm:$0xf]
  %v37 = vld [vmem:[%s1 + $0x1c] sm:$0xf]
  %v38 = vld [vmem:[%s1 + $0x20] sm:$0xf]
  %v39 = vld [vmem:[%s1 + $0x24] sm:$0xf]
  %v40 = vld [vmem:[%s1 + $0x28] sm:$0xf]
  %v41 = vld [vmem:[%s1 + $0x2c] sm:$0xf]
  %v42 = vld [vmem:[%s1 + $0x30] sm:$0xf]
  %v43 = vld [vmem:[%s1 + $0x34] sm:$0xf]
  %v44 = vld [vmem:[%s1 + $0x38] sm:$0xf]
  %v45 = vld [vmem:[%s1 + $0x3c] sm:$0xf]
  %v62 = vunpack.c.l.b16 %v14
  %v63 = vunpack.c.l.b16 %v15
  %v64 = vunpack.c.l.b16 %v16
  %v65 = vunpack.c.l.b16 %v17
  %v66 = vunpack.c.l.b16 %v18
  %v67 = vunpack.c.l.b16 %v19
  %v68 = vunpack.c.l.b16 %v20
  %v69 = vunpack.c.l.b16 %v21
  %v70 = vunpack.c.l.b16 %v22
  %v71 = vunpack.c.l.b16 %v23
  %v72 = vunpack.c.l.b16 %v24
  %v73 = vunpack.c.l.b16 %v25
  %v74 = vunpack.c.l.b16 %v26
  %v75 = vunpack.c.l.b16 %v27
  %v76 = vunpack.c.l.b16 %v28
  %v77 = vunpack.c.l.b16 %v29
  %v78 = vpack.c.b16 %v63, %v62
  %v79 = vpack.c.b16 %v65, %v64
  %v80 = vpack.c.b16 %v67, %v66
  %v81 = vpack.c.b16 %v69, %v68
  %v82 = vpack.c.b16 %v71, %v70
  %v83 = vpack.c.b16 %v73, %v72
  %v84 = vpack.c.b16 %v75, %v74
  %v85 = vpack.c.b16 %v77, %v76
  %v110 = vunpack.c.l.b16 %v30
  %v111 = vunpack.c.l.b16 %v31
  %v112 = vunpack.c.l.b16 %v32
  %v113 = vunpack.c.l.b16 %v33
  %v114 = vunpack.c.l.b16 %v34
  %v115 = vunpack.c.l.b16 %v35
  %v116 = vunpack.c.l.b16 %v36
  %v117 = vunpack.c.l.b16 %v37
  %v118 = vunpack.c.l.b16 %v38
  %v119 = vunpack.c.l.b16 %v39
  %v120 = vunpack.c.l.b16 %v40
  %v121 = vunpack.c.l.b16 %v41
  %v122 = vunpack.c.l.b16 %v42
  %v123 = vunpack.c.l.b16 %v43
  %v124 = vunpack.c.l.b16 %v44
  %v125 = vunpack.c.l.b16 %v45
  %v126 = vpack.c.b16 %v111, %v110
  %v127 = vpack.c.b16 %v113, %v112
  %v128 = vpack.c.b16 %v115, %v114
  %v129 = vpack.c.b16 %v117, %v116
  %v130 = vpack.c.b16 %v119, %v118
  %v131 = vpack.c.b16 %v121, %v120
  %v132 = vpack.c.b16 %v123, %v122
  %v133 = vpack.c.b16 %v125, %v124
  %142 = vmatprep.subr.bf16.mxu0 0
  %143 = vmatpush1.bf16.msra.mxu0 %v126
  %144 = vmatprep.subr.bf16.mxu0 0
  %145 = vmatpush1.bf16.msra.mxu0 %v127
  %146 = vmatprep.subr.bf16.mxu0 0
  %147 = vmatpush1.bf16.msra.mxu0 %v128
  %148 = vmatprep.subr.bf16.mxu0 0
  %149 = vmatpush1.bf16.msra.mxu0 %v129
  %150 = vmatprep.subr.bf16.mxu0 0
  %151 = vmatpush1.bf16.msra.mxu0 %v130
  %152 = vmatprep.subr.bf16.mxu0 0
  %153 = vmatpush1.bf16.msra.mxu0 %v131
  %154 = vmatprep.subr.bf16.mxu0 0
  %155 = vmatpush1.bf16.msra.mxu0 %v132
  %156 = vmatprep.subr.bf16.mxu0 0
  %157 = vmatpush1.bf16.msra.mxu0 %v133
  %158 = vmatprep.subr.bf16.mxu0 0
  %159 = vmatpush1.bf16.msra.mxu0 0
  %160 = vmatprep.subr.bf16.mxu0 0
  %161 = vmatpush1.bf16.msra.mxu0 0
  %162 = vmatprep.subr.bf16.mxu0 0
  %163 = vmatpush1.bf16.msra.mxu0 0
  %164 = vmatprep.subr.bf16.mxu0 0
  %165 = vmatpush1.bf16.msra.mxu0 0
  %166 = vmatprep.subr.bf16.mxu0 0
  %167 = vmatpush1.bf16.msra.mxu0 0
  %168 = vmatprep.subr.bf16.mxu0 0
  %169 = vmatpush1.bf16.msra.mxu0 0
  %170 = vmatprep.subr.bf16.mxu0 0
  %171 = vmatpush1.bf16.msra.mxu0 0
  %172 = vmatprep.subr.bf16.mxu0 0
  %173 = vmatpush1.bf16.msra.mxu0 0
  %174 = vmatprep.mubr.bf16.mxu0 0
  %175 = vmatmul.mubr.bf16.gmra.mrb[0].mxu0 %v78
  %v176 = vpop.f32.mrb[0].mxu0
  %v177 = vadd.f32 0.0, %v176
  %v178 = vpop.f32.mrb[0].mxu0
  %v179 = vpop.f32.mrb[0].mxu0
  %v180 = vadd.f32 0.0, %v179
  %v181 = vpop.f32.mrb[0].mxu0
  %182 = vmatprep.mubr.bf16.mxu0 0
  %183 = vmatmul.mubr.bf16.gmra.mrb[0].mxu0 %v79
  %v184 = vpop.f32.mrb[0].mxu0
  %v185 = vadd.f32 0.0, %v184
  %v186 = vpop.f32.mrb[0].mxu0
  %v187 = vpop.f32.mrb[0].mxu0
  %v188 = vadd.f32 0.0, %v187
  %v189 = vpop.f32.mrb[0].mxu0
  %190 = vmatprep.mubr.bf16.mxu0 0
  %191 = vmatmul.mubr.bf16.gmra.mrb[0].mxu0 %v80
  %v192 = vpop.f32.mrb[0].mxu0
  %v193 = vadd.f32 0.0, %v192
  %v194 = vpop.f32.mrb[0].mxu0
  %v195 = vpop.f32.mrb[0].mxu0
  %v196 = vadd.f32 0.0, %v195
  %v197 = vpop.f32.mrb[0].mxu0
  %198 = vmatprep.mubr.bf16.mxu0 0
  %199 = vmatmul.mubr.bf16.gmra.mrb[0].mxu0 %v81
  %v200 = vpop.f32.mrb[0].mxu0
  %v201 = vadd.f32 0.0, %v200
  %v202 = vpop.f32.mrb[0].mxu0
  %v203 = vpop.f32.mrb[0].mxu0
  %v204 = vadd.f32 0.0, %v203
  %v205 = vpop.f32.mrb[0].mxu0
  %206 = vmatprep.mubr.bf16.mxu0 0
  %207 = vmatmul.mubr.bf16.gmra.mrb[0].mxu0 %v82
  %v208 = vpop.f32.mrb[0].mxu0
  %v209 = vadd.f32 0.0, %v208
  %v210 = vpop.f32.mrb[0].mxu0
  %v211 = vpop.f32.mrb[0].mxu0
  %v212 = vadd.f32 0.0, %v211
  %v213 = vpop.f32.mrb[0].mxu0
  %214 = vmatprep.mubr.bf16.mxu0 0
  %215 = vmatmul.mubr.bf16.gmra.mrb[0].mxu0 %v83
  %v216 = vpop.f32.mrb[0].mxu0
  %v217 = vadd.f32 0.0, %v216
  %v218 = vpop.f32.mrb[0].mxu0
  %v219 = vpop.f32.mrb[0].mxu0
  %v220 = vadd.f32 0.0, %v219
  %v221 = vpop.f32.mrb[0].mxu0
  %222 = vmatprep.mubr.bf16.mxu0 0
  %223 = vmatmul.mubr.bf16.gmra.mrb[0].mxu0 %v84
  %v224 = vpop.f32.mrb[0].mxu0
  %v225 = vadd.f32 0.0, %v224
  %v226 = vpop.f32.mrb[0].mxu0
  %v227 = vpop.f32.mrb[0].mxu0
  %v228 = vadd.f32 0.0, %v227
  %v229 = vpop.f32.mrb[0].mxu0
  %230 = vmatprep.mubr.bf16.mxu0 0
  %231 = vmatmul.mubr.bf16.gmra.mrb[0].mxu0 %v85
  %v232 = vpop.f32.mrb[0].mxu0
  %v233 = vadd.f32 0.0, %v232
  %v234 = vpop.f32.mrb[0].mxu0
  %v235 = vpop.f32.mrb[0].mxu0
  %v236 = vadd.f32 0.0, %v235
  %v237 = vpop.f32.mrb[0].mxu0
  %238 = vdwg.mxu0
  %vm239 = vcmask 130048
  %240 = vst.msk [vmem:[%s2] sm:$0xff] %vm239, %v177
  %241 = vst.msk [vmem:[%s2 + $0x8] sm:$0xff] %vm239, %v180
  %242 = vst.msk [vmem:[%s2 + $0x10] sm:$0xff] %vm239, %v185
  %243 = vst.msk [vmem:[%s2 + $0x18] sm:$0xff] %vm239, %v188
  %244 = vst.msk [vmem:[%s2 + $0x20] sm:$0xff] %vm239, %v193
  %245 = vst.msk [vmem:[%s2 + $0x28] sm:$0xff] %vm239, %v196
  %246 = vst.msk [vmem:[%s2 + $0x30] sm:$0xff] %vm239, %v201
  %247 = vst.msk [vmem:[%s2 + $0x38] sm:$0xff] %vm239, %v204
  %248 = vst.msk [vmem:[%s2 + $0x40] sm:$0xff] %vm239, %v209
  %249 = vst.msk [vmem:[%s2 + $0x48] sm:$0xff] %vm239, %v212
  %250 = vst.msk [vmem:[%s2 + $0x50] sm:$0xff] %vm239, %v217
  %251 = vst.msk [vmem:[%s2 + $0x58] sm:$0xff] %vm239, %v220
  %252 = vst.msk [vmem:[%s2 + $0x60] sm:$0xff] %vm239, %v225
  %253 = vst.msk [vmem:[%s2 + $0x68] sm:$0xff] %vm239, %v228
  %254 = vst.msk [vmem:[%s2 + $0x70] sm:$0xff] %vm239, %v233
  %255 = vst.msk [vmem:[%s2 + $0x78] sm:$0xff] %vm239, %v236
  %p256 = scmp.eq.s32.totalorder 0, 0
  // Predicated region
  $region10: #{a_call__.7} parent=0 // pred_check
    %p257 = pneg %p256
  $region11: #{a_call__.7} parent=0 // pred_check_branch
    %259 = sbr.rel (%p257) target = $region13
  $region12: #{a_call__.7} parent=0 // pred_region
    %vm260 = vcmask 123904
    %261 = vst.msk [vmem:[%s3] sm:$0x3] %vm260, 0.0
  $region13: #{a_call__.7} parent=0 // pred_fallthru
    _
  %v262 = vld [vmem:[%s3] sm:$0x1]
  %v263 = vsel %vm239, %v177, 0.0
  %v264 = vsel %vm239, %v180, 0.0
  %v265 = vadd.f32 %v263, %v264
  %v266 = vsel %vm239, %v185, 0.0
  %v267 = vadd.f32 %v265, %v266
  %v268 = vsel %vm239, %v188, 0.0
  %v269 = vadd.f32 %v267, %v268
  %v270 = vsel %vm239, %v193, 0.0
  %v271 = vadd.f32 %v269, %v270
  %v272 = vsel %vm239, %v196, 0.0
  %v273 = vadd.f32 %v271, %v272
  %v274 = vsel %vm239, %v201, 0.0
  %v275 = vadd.f32 %v273, %v274
  %v276 = vsel %vm239, %v204, 0.0
  %v277 = vadd.f32 %v275, %v276
  %v278 = vsel %vm239, %v209, 0.0
  %v279 = vadd.f32 %v277, %v278
  %v280 = vsel %vm239, %v212, 0.0
  %v281 = vadd.f32 %v279, %v280
  %v282 = vsel %vm239, %v217, 0.0
  %v283 = vadd.f32 %v281, %v282
  %v284 = vsel %vm239, %v220, 0.0
  %v285 = vadd.f32 %v283, %v284
  %v286 = vsel %vm239, %v225, 0.0
  %v287 = vadd.f32 %v285, %v286
  %v288 = vsel %vm239, %v228, 0.0
  %v289 = vadd.f32 %v287, %v288
  %v290 = vsel %vm239, %v233, 0.0
  %v291 = vadd.f32 %v289, %v290
  %v292 = vsel %vm239, %v236, 0.0
  %v293 = vadd.f32 %v291, %v292
  %v294 = vrot.slane %v293, 4
  %v295 = vadd.f32 %v293, %v294
  %v296 = vrot.slane %v295, 2
  %v297 = vadd.f32 %v295, %v296
  %v298 = vrot.slane %v297, 1
  %v299 = vadd.f32 %v297, %v298
  %v300 = vadd.f32 %v262, %v299
  %vm301 = vcmask 122880
  %302 = vst.msk [vmem:[%s3] sm:$0x1] %vm301, %v300
  %v303 = vld [vmem:[%s3 + $0x1] sm:$0x1]
  %v304 = vmul.f32 %v177, %v177
  %v305 = vmul.f32 %v180, %v180
  %v306 = vmul.f32 %v185, %v185
  %v307 = vmul.f32 %v188, %v188
  %v308 = vmul.f32 %v193, %v193
  %v309 = vmul.f32 %v196, %v196
  %v310 = vmul.f32 %v201, %v201
  %v311 = vmul.f32 %v204, %v204
  %v312 = vmul.f32 %v209, %v209
  %v313 = vmul.f32 %v212, %v212
  %v314 = vmul.f32 %v217, %v217
  %v315 = vmul.f32 %v220, %v220
  %v316 = vmul.f32 %v225, %v225
  %v317 = vmul.f32 %v228, %v228
  %v318 = vmul.f32 %v233, %v233
  %v319 = vmul.f32 %v236, %v236
  %v320 = vsel %vm239, %v304, 0.0
  %v321 = vsel %vm239, %v305, 0.0
  %v322 = vadd.f32 %v320, %v321
  %v323 = vsel %vm239, %v306, 0.0
  %v324 = vadd.f32 %v322, %v323
  %v325 = vsel %vm239, %v307, 0.0
  %v326 = vadd.f32 %v324, %v325
  %v327 = vsel %vm239, %v308, 0.0
  %v328 = vadd.f32 %v326, %v327
  %v329 = vsel %vm239, %v309, 0.0
  %v330 = vadd.f32 %v328, %v329
  %v331 = vsel %vm239, %v310, 0.0
  %v332 = vadd.f32 %v330, %v331
  %v333 = vsel %vm239, %v311, 0.0
  %v334 = vadd.f32 %v332, %v333
  %v335 = vsel %vm239, %v312, 0.0
  %v336 = vadd.f32 %v334, %v335
  %v337 = vsel %vm239, %v313, 0.0
  %v338 = vadd.f32 %v336, %v337
  %v339 = vsel %vm239, %v314, 0.0
  %v340 = vadd.f32 %v338, %v339
  %v341 = vsel %vm239, %v315, 0.0
  %v342 = vadd.f32 %v340, %v341
  %v343 = vsel %vm239, %v316, 0.0
  %v344 = vadd.f32 %v342, %v343
  %v345 = vsel %vm239, %v317, 0.0
  %v346 = vadd.f32 %v344, %v345
  %v347 = vsel %vm239, %v318, 0.0
  %v348 = vadd.f32 %v346, %v347
  %v349 = vsel %vm239, %v319, 0.0
  %v350 = vadd.f32 %v348, %v349
  %v351 = vrot.slane %v350, 4
  %v352 = vadd.f32 %v350, %v351
  %v353 = vrot.slane %v352, 2
  %v354 = vadd.f32 %v352, %v353
  %v355 = vrot.slane %v354, 1
  %v356 = vadd.f32 %v354, %v355
  %v357 = vadd.f32 %v303, %v356
  %358 = vst.msk [vmem:[%s3 + $0x1] sm:$0x1] %vm301, %v357
  // Predicated region
  $region14: #{a_call__.7} parent=0 // pred_check
    _
  $region15: #{a_call__.7} parent=0 // pred_check_branch
    %360 = sbr.rel (0) target = $region17
  $region16: #{a_call__.7} parent=0 // pred_region
    _
  $region17: #{a_call__.7} parent=0 // pred_fallthru
    _
  // Predicated region
  $region18: #{a_call__.7} parent=0 // pred_check
    _
  $region19: #{a_call__.7} parent=0 // pred_check_branch
    %362 = sbr.rel (0) target = $region21
  $region20: #{a_call__.7} parent=0 // pred_region
    _
  $region21: #{a_call__.7} parent=0 // pred_fallthru
    _
  // Predicated region
  $region22: #{a_call__.7} parent=0 // pred_check
    _
  $region23: #{a_call__.7} parent=0 // pred_check_branch
    %364 = sbr.rel (0) target = $region25
  $region24: #{a_call__.7} parent=0 // pred_region
    _
  $region25: #{a_call__.7} parent=0 // pred_fallthru
    _
  // Predicated region
  $region26: #{a_call__.7} parent=0 // pred_check
    _
  $region27: #{a_call__.7} parent=0 // pred_check_branch
    %366 = sbr.rel (0) target = $region29
  $region28: #{a_call__.7} parent=0 // pred_region
    _
  $region29: #{a_call__.7} parent=0 // pred_fallthru
    _

// kernel: a_call__.8
$region0: #{a_call__.8}
  #allocation0 [shape = 'u32[]', space=smem, size = 0x4, offset = 0x4, fixed_abs, tag = 'smem constant byte address 0x4 - core index']
  #allocation1 [shape = 'u32[144,128]{1,0:T(1,128)}', space=vmem, size = 0x12000, scoped, tag = 'internal scratch']
  %s0 = inlined_call_operand.vmem [shape: f32[128,16], index: 0, kind: input, shape index: {}]
  %s1 = inlined_call_operand.vmem [shape: f32[1,16], index: 1, kind: input, shape index: {}]
  %s2 = inlined_call_operand.vmem [shape: f32[1,16], index: 2, kind: input, shape index: {}]
  %s3 = inlined_call_operand.vmem [shape: f32[128,16], index: 3, kind: output, shape index: {}]
  %s4 = sld [smem:[#allocation0]]
  $region22: #{a_call__.8} parent=0
    _
  %s6 = ssub.s32 1, %s4
  %s7 = scalar_select 0, %s6, %s4
  // Predicated region
  $region2: #{a_call__.8} parent=0 // pred_check
    _
  $region3: #{a_call__.8} parent=0 // pred_check_branch
    %9 = sbr.rel (0) target = $region5
  $region4: #{a_call__.8} parent=0 // pred_region
    _
  $region5: #{a_call__.8} parent=0 // pred_fallthru
    _
  // Predicated region
  $region6: #{a_call__.8} parent=0 // pred_check
    _
  $region7: #{a_call__.8} parent=0 // pred_check_branch
    %11 = sbr.rel (0) target = $region9
  $region8: #{a_call__.8} parent=0 // pred_region
    _
  $region9: #{a_call__.8} parent=0 // pred_fallthru
    _
  // Predicated region
  $region10: #{a_call__.8} parent=0 // pred_check
    _
  $region11: #{a_call__.8} parent=0 // pred_check_branch
    %13 = sbr.rel (0) target = $region13
  $region12: #{a_call__.8} parent=0 // pred_region
    _
  $region13: #{a_call__.8} parent=0 // pred_fallthru
    _
  %v14 = vld [vmem:[%s0] sm:$0xff]
  %v15 = vld [vmem:[%s0 + $0x8] sm:$0xff]
  %v16 = vld [vmem:[%s0 + $0x10] sm:$0xff]
  %v17 = vld [vmem:[%s0 + $0x18] sm:$0xff]
  %v18 = vld [vmem:[%s0 + $0x20] sm:$0xff]
  %v19 = vld [vmem:[%s0 + $0x28] sm:$0xff]
  %v20 = vld [vmem:[%s0 + $0x30] sm:$0xff]
  %v21 = vld [vmem:[%s0 + $0x38] sm:$0xff]
  %v22 = vld [vmem:[%s0 + $0x40] sm:$0xff]
  %v23 = vld [vmem:[%s0 + $0x48] sm:$0xff]
  %v24 = vld [vmem:[%s0 + $0x50] sm:$0xff]
  %v25 = vld [vmem:[%s0 + $0x58] sm:$0xff]
  %v26 = vld [vmem:[%s0 + $0x60] sm:$0xff]
  %v27 = vld [vmem:[%s0 + $0x68] sm:$0xff]
  %v28 = vld [vmem:[%s0 + $0x70] sm:$0xff]
  %v29 = vld [vmem:[%s0 + $0x78] sm:$0xff]
  %v30 = vld [vmem:[%s1] sm:$0x1]
  %v32 = vlaneseq
  %v33 = vshrl.u32 %v32, 7
  %v34 = vsub.s32 0, %v33
  %v35 = vrot.slane %v30, %v34
  %v37 = vmul.f32 %v14, %v35
  %v38 = vmul.f32 %v15, %v35
  %v39 = vmul.f32 %v16, %v35
  %v40 = vmul.f32 %v17, %v35
  %v41 = vmul.f32 %v18, %v35
  %v42 = vmul.f32 %v19, %v35
  %v43 = vmul.f32 %v20, %v35
  %v44 = vmul.f32 %v21, %v35
  %v45 = vmul.f32 %v22, %v35
  %v46 = vmul.f32 %v23, %v35
  %v47 = vmul.f32 %v24, %v35
  %v48 = vmul.f32 %v25, %v35
  %v49 = vmul.f32 %v26, %v35
  %v50 = vmul.f32 %v27, %v35
  %v51 = vmul.f32 %v28, %v35
  %v52 = vmul.f32 %v29, %v35
  %v53 = vld [vmem:[%s2] sm:$0x1]
  %v55 = vlaneseq
  %v56 = vshrl.u32 %v55, 7
  %v57 = vsub.s32 0, %v56
  %v58 = vrot.slane %v53, %v57
  %v60 = vadd.f32 %v37, %v58
  %v61 = vadd.f32 %v38, %v58
  %v62 = vadd.f32 %v39, %v58
  %v63 = vadd.f32 %v40, %v58
  %v64 = vadd.f32 %v41, %v58
  %v65 = vadd.f32 %v42, %v58
  %v66 = vadd.f32 %v43, %v58
  %v67 = vadd.f32 %v44, %v58
  %v68 = vadd.f32 %v45, %v58
  %v69 = vadd.f32 %v46, %v58
  %v70 = vadd.f32 %v47, %v58
  %v71 = vadd.f32 %v48, %v58
  %v72 = vadd.f32 %v49, %v58
  %v73 = vadd.f32 %v50, %v58
  %v74 = vadd.f32 %v51, %v58
  %v75 = vadd.f32 %v52, %v58
  %vm76 = vcmp.ge.f32.partialorder %v60, 0.0
  %vm77 = vcmp.ge.f32.partialorder %v61, 0.0
  %vm78 = vcmp.ge.f32.partialorder %v62, 0.0
  %vm79 = vcmp.ge.f32.partialorder %v63, 0.0
  %vm80 = vcmp.ge.f32.partialorder %v64, 0.0
  %vm81 = vcmp.ge.f32.partialorder %v65, 0.0
  %vm82 = vcmp.ge.f32.partialorder %v66, 0.0
  %vm83 = vcmp.ge.f32.partialorder %v67, 0.0
  %vm84 = vcmp.ge.f32.partialorder %v68, 0.0
  %vm85 = vcmp.ge.f32.partialorder %v69, 0.0
  %vm86 = vcmp.ge.f32.partialorder %v70, 0.0
  %vm87 = vcmp.ge.f32.partialorder %v71, 0.0
  %vm88 = vcmp.ge.f32.partialorder %v72, 0.0
  %vm89 = vcmp.ge.f32.partialorder %v73, 0.0
  %vm90 = vcmp.ge.f32.partialorder %v74, 0.0
  %vm91 = vcmp.ge.f32.partialorder %v75, 0.0
  %v92 = vmul.f32 %v60, 0.01
  %v93 = vmul.f32 %v61, 0.01
  %v94 = vmul.f32 %v62, 0.01
  %v95 = vmul.f32 %v63, 0.01
  %v96 = vmul.f32 %v64, 0.01
  %v97 = vmul.f32 %v65, 0.01
  %v98 = vmul.f32 %v66, 0.01
  %v99 = vmul.f32 %v67, 0.01
  %v100 = vmul.f32 %v68, 0.01
  %v101 = vmul.f32 %v69, 0.01
  %v102 = vmul.f32 %v70, 0.01
  %v103 = vmul.f32 %v71, 0.01
  %v104 = vmul.f32 %v72, 0.01
  %v105 = vmul.f32 %v73, 0.01
  %v106 = vmul.f32 %v74, 0.01
  %v107 = vmul.f32 %v75, 0.01
  %v108 = vsel %vm76, %v60, %v92
  %v109 = vsel %vm77, %v61, %v93
  %v110 = vsel %vm78, %v62, %v94
  %v111 = vsel %vm79, %v63, %v95
  %v112 = vsel %vm80, %v64, %v96
  %v113 = vsel %vm81, %v65, %v97
  %v114 = vsel %vm82, %v66, %v98
  %v115 = vsel %vm83, %v67, %v99
  %v116 = vsel %vm84, %v68, %v100
  %v117 = vsel %vm85, %v69, %v101
  %v118 = vsel %vm86, %v70, %v102
  %v119 = vsel %vm87, %v71, %v103
  %v120 = vsel %vm88, %v72, %v104
  %v121 = vsel %vm89, %v73, %v105
  %v122 = vsel %vm90, %v74, %v106
  %v123 = vsel %vm91, %v75, %v107
  %vm124 = vcmask 130048
  %125 = vst.msk [vmem:[%s3] sm:$0xff] %vm124, %v108
  %126 = vst.msk [vmem:[%s3 + $0x8] sm:$0xff] %vm124, %v109
  %127 = vst.msk [vmem:[%s3 + $0x10] sm:$0xff] %vm124, %v110
  %128 = vst.msk [vmem:[%s3 + $0x18] sm:$0xff] %vm124, %v111
  %129 = vst.msk [vmem:[%s3 + $0x20] sm:$0xff] %vm124, %v112
  %130 = vst.msk [vmem:[%s3 + $0x28] sm:$0xff] %vm124, %v113
  %131 = vst.msk [vmem:[%s3 + $0x30] sm:$0xff] %vm124, %v114
  %132 = vst.msk [vmem:[%s3 + $0x38] sm:$0xff] %vm124, %v115
  %133 = vst.msk [vmem:[%s3 + $0x40] sm:$0xff] %vm124, %v116
  %134 = vst.msk [vmem:[%s3 + $0x48] sm:$0xff] %vm124, %v117
  %135 = vst.msk [vmem:[%s3 + $0x50] sm:$0xff] %vm124, %v118
  %136 = vst.msk [vmem:[%s3 + $0x58] sm:$0xff] %vm124, %v119
  %137 = vst.msk [vmem:[%s3 + $0x60] sm:$0xff] %vm124, %v120
  %138 = vst.msk [vmem:[%s3 + $0x68] sm:$0xff] %vm124, %v121
  %139 = vst.msk [vmem:[%s3 + $0x70] sm:$0xff] %vm124, %v122
  %140 = vst.msk [vmem:[%s3 + $0x78] sm:$0xff] %vm124, %v123
  // Predicated region
  $region14: #{a_call__.8} parent=0 // pred_check
    _
  $region15: #{a_call__.8} parent=0 // pred_check_branch
    %142 = sbr.rel (0) target = $region17
  $region16: #{a_call__.8} parent=0 // pred_region
    _
  $region17: #{a_call__.8} parent=0 // pred_fallthru
    _
  // Predicated region
  $region18: #{a_call__.8} parent=0 // pred_check
    _
  $region19: #{a_call__.8} parent=0 // pred_check_branch
    %144 = sbr.rel (0) target = $region21
  $region20: #{a_call__.8} parent=0 // pred_region
    _
  $region21: #{a_call__.8} parent=0 // pred_fallthru
    _

// kernel: a_call__.9
$region0: #{a_call__.9}
  #allocation0 [shape = 'u32[]', space=smem, size = 0x4, offset = 0x4, fixed_abs, tag = 'smem constant byte address 0x4 - core index']
  #allocation1 [shape = 'u32[144,128]{1,0:T(1,128)}', space=vmem, size = 0x12000, scoped, tag = 'internal scratch']
  %s0 = inlined_call_operand.vmem [shape: bf16[32,256], index: 0, kind: input, shape index: {}]
  %s1 = inlined_call_operand.vmem [shape: bf16[256,32], index: 1, kind: input, shape index: {}]
  %s2 = inlined_call_operand.vmem [shape: f32[32,32], index: 2, kind: output, shape index: {0}]
  %s3 = inlined_call_operand.vmem [shape: f32[2,32], index: 3, kind: output, shape index: {1}]
  %4 = xla_tuple %s2, %s3
  %s5 = sld [smem:[#allocation0]]
  $region30: #{a_call__.9} parent=0
    _
  %s7 = ssub.s32 1, %s5
  %s8 = scalar_select 0, %s7, %s5
  // Predicated region
  $region2: #{a_call__.9} parent=0 // pred_check
    _
  $region3: #{a_call__.9} parent=0 // pred_check_branch
    %10 = sbr.rel (0) target = $region5
  $region4: #{a_call__.9} parent=0 // pred_region
    _
  $region5: #{a_call__.9} parent=0 // pred_fallthru
    _
  // Predicated region
  $region6: #{a_call__.9} parent=0 // pred_check
    _
  $region7: #{a_call__.9} parent=0 // pred_check_branch
    %12 = sbr.rel (0) target = $region9
  $region8: #{a_call__.9} parent=0 // pred_region
    _
  $region9: #{a_call__.9} parent=0 // pred_fallthru
    _
  %v14 = vld [vmem:[%s0] sm:$0xff]
  %v15 = vld [vmem:[%s0 + $0x8] sm:$0xff]
  %v16 = vld [vmem:[%s0 + $0x10] sm:$0xff]
  %v17 = vld [vmem:[%s0 + $0x18] sm:$0xff]
  %v18 = vld [vmem:[%s1] sm:$0xf]
  %v19 = vld [vmem:[%s1 + $0x4] sm:$0xf]
  %v20 = vld [vmem:[%s1 + $0x8] sm:$0xf]
  %v21 = vld [vmem:[%s1 + $0xc] sm:$0xf]
  %v22 = vld [vmem:[%s1 + $0x10] sm:$0xf]
  %v23 = vld [vmem:[%s1 + $0x14] sm:$0xf]
  %v24 = vld [vmem:[%s1 + $0x18] sm:$0xf]
  %v25 = vld [vmem:[%s1 + $0x1c] sm:$0xf]
  %v26 = vld [vmem:[%s1 + $0x20] sm:$0xf]
  %v27 = vld [vmem:[%s1 + $0x24] sm:$0xf]
  %v28 = vld [vmem:[%s1 + $0x28] sm:$0xf]
  %v29 = vld [vmem:[%s1 + $0x2c] sm:$0xf]
  %v30 = vld [vmem:[%s1 + $0x30] sm:$0xf]
  %v31 = vld [vmem:[%s1 + $0x34] sm:$0xf]
  %v32 = vld [vmem:[%s1 + $0x38] sm:$0xf]
  %v33 = vld [vmem:[%s1 + $0x3c] sm:$0xf]
  %v34 = vld [vmem:[%s1 + $0x40] sm:$0xf]
  %v35 = vld [vmem:[%s1 + $0x44] sm:$0xf]
  %v36 = vld [vmem:[%s1 + $0x48] sm:$0xf]
  %v37 = vld [vmem:[%s1 + $0x4c] sm:$0xf]
  %v38 = vld [vmem:[%s1 + $0x50] sm:$0xf]
  %v39 = vld [vmem:[%s1 + $0x54] sm:$0xf]
  %v40 = vld [vmem:[%s1 + $0x58] sm:$0xf]
  %v41 = vld [vmem:[%s1 + $0x5c] sm:$0xf]
  %v42 = vld [vmem:[%s1 + $0x60] sm:$0xf]
  %v43 = vld [vmem:[%s1 + $0x64] sm:$0xf]
  %v44 = vld [vmem:[%s1 + $0x68] sm:$0xf]
  %v45 = vld [vmem:[%s1 + $0x6c] sm:$0xf]
  %v46 = vld [vmem:[%s1 + $0x70] sm:$0xf]
  %v47 = vld [vmem:[%s1 + $0x74] sm:$0xf]
  %v48 = vld [vmem:[%s1 + $0x78] sm:$0xf]
  %v49 = vld [vmem:[%s1 + $0x7c] sm:$0xf]
  %v54 = vunpack.c.l.b16 %v14
  %v55 = vunpack.c.h.b16 %v14
  %v56 = vunpack.c.l.b16 %v15
  %v57 = vunpack.c.h.b16 %v15
  %v58 = vunpack.c.l.b16 %v16
  %v59 = vunpack.c.h.b16 %v16
  %v60 = vunpack.c.l.b16 %v17
  %v61 = vunpack.c.h.b16 %v17
  %v62 = vpack.c.b16 %v56, %v54
  %v63 = vpack.c.b16 %v57, %v55
  %v64 = vpack.c.b16 %v60, %v58
  %v65 = vpack.c.b16 %v61, %v59
  %v102 = vunpack.c.l.b16 %v18
  %v103 = vunpack.c.l.b16 %v19
  %v104 = vunpack.c.l.b16 %v20
  %v105 = vunpack.c.l.b16 %v21
  %v106 = vunpack.c.l.b16 %v22
  %v107 = vunpack.c.l.b16 %v23
  %v108 = vunpack.c.l.b16 %v24
  %v109 = vunpack.c.l.b16 %v25
  %v110 = vunpack.c.l.b16 %v26
  %v111 = vunpack.c.l.b16 %v27
  %v112 = vunpack.c.l.b16 %v28
  %v113 = vunpack.c.l.b16 %v29
  %v114 = vunpack.c.l.b16 %v30
  %v115 = vunpack.c.l.b16 %v31
  %v116 = vunpack.c.l.b16 %v32
  %v117 = vunpack.c.l.b16 %v33
  %v118 = vunpack.c.l.b16 %v34
  %v119 = vunpack.c.l.b16 %v35
  %v120 = vunpack.c.l.b16 %v36
  %v121 = vunpack.c.l.b16 %v37
  %v122 = vunpack.c.l.b16 %v38
  %v123 = vunpack.c.l.b16 %v39
  %v124 = vunpack.c.l.b16 %v40
  %v125 = vunpack.c.l.b16 %v41
  %v126 = vunpack.c.l.b16 %v42
  %v127 = vunpack.c.l.b16 %v43
  %v128 = vunpack.c.l.b16 %v44
  %v129 = vunpack.c.l.b16 %v45
  %v130 = vunpack.c.l.b16 %v46
  %v131 = vunpack.c.l.b16 %v47
  %v132 = vunpack.c.l.b16 %v48
  %v133 = vunpack.c.l.b16 %v49
  %v134 = vpack.c.b16 %v103, %v102
  %v135 = vpack.c.b16 %v105, %v104
  %v136 = vpack.c.b16 %v107, %v106
  %v137 = vpack.c.b16 %v109, %v108
  %v138 = vpack.c.b16 %v111, %v110
  %v139 = vpack.c.b16 %v113, %v112
  %v140 = vpack.c.b16 %v115, %v114
  %v141 = vpack.c.b16 %v117, %v116
  %v142 = vpack.c.b16 %v119, %v118
  %v143 = vpack.c.b16 %v121, %v120
  %v144 = vpack.c.b16 %v123, %v122
  %v145 = vpack.c.b16 %v125, %v124
  %v146 = vpack.c.b16 %v127, %v126
  %v147 = vpack.c.b16 %v129, %v128
  %v148 = vpack.c.b16 %v131, %v130
  %v149 = vpack.c.b16 %v133, %v132
  %166 = vmatprep.subr.bf16.mxu0 0
  %167 = vmatpush1.bf16.msra.mxu0 %v134
  %168 = vmatprep.subr.bf16.mxu0 0
  %169 = vmatpush1.bf16.msra.mxu0 %v135
  %170 = vmatprep.subr.bf16.mxu0 0
  %171 = vmatpush1.bf16.msra.mxu0 %v136
  %172 = vmatprep.subr.bf16.mxu0 0
  %173 = vmatpush1.bf16.msra.mxu0 %v137
  %174 = vmatprep.subr.bf16.mxu0 0
  %175 = vmatpush1.bf16.msra.mxu0 %v138
  %176 = vmatprep.subr.bf16.mxu0 0
  %177 = vmatpush1.bf16.msra.mxu0 %v139
  %178 = vmatprep.subr.bf16.mxu0 0
  %179 = vmatpush1.bf16.msra.mxu0 %v140
  %180 = vmatprep.subr.bf16.mxu0 0
  %181 = vmatpush1.bf16.msra.mxu0 %v141
  %182 = vmatprep.subr.bf16.mxu0 0
  %183 = vmatpush1.bf16.msra.mxu0 %v142
  %184 = vmatprep.subr.bf16.mxu0 0
  %185 = vmatpush1.bf16.msra.mxu0 %v143
  %186 = vmatprep.subr.bf16.mxu0 0
  %187 = vmatpush1.bf16.msra.mxu0 %v144
  %188 = vmatprep.subr.bf16.mxu0 0
  %189 = vmatpush1.bf16.msra.mxu0 %v145
  %190 = vmatprep.subr.bf16.mxu0 0
  %191 = vmatpush1.bf16.msra.mxu0 %v146
  %192 = vmatprep.subr.bf16.mxu0 0
  %193 = vmatpush1.bf16.msra.mxu0 %v147
  %194 = vmatprep.subr.bf16.mxu0 0
  %195 = vmatpush1.bf16.msra.mxu0 %v148
  %196 = vmatprep.subr.bf16.mxu0 0
  %197 = vmatpush1.bf16.msra.mxu0 %v149
  %198 = vmatprep.mubr.bf16.mxu0 %v63
  %199 = vmatmul.mubr.bf16.gmra.mrb[0].mxu0 %v62
  %v200 = vpop.f32.mrb[0].mxu0
  %v201 = vadd.f32 0.0, %v200
  %v202 = vpop.f32.mrb[0].mxu0
  %v203 = vpop.f32.mrb[0].mxu0
  %v204 = vadd.f32 0.0, %v203
  %v205 = vpop.f32.mrb[0].mxu0
  %206 = vmatprep.mubr.bf16.mxu0 %v65
  %207 = vmatmul.mubr.bf16.gmra.mrb[0].mxu0 %v64
  %v208 = vpop.f32.mrb[0].mxu0
  %v209 = vadd.f32 0.0, %v208
  %v210 = vpop.f32.mrb[0].mxu0
  %v211 = vpop.f32.mrb[0].mxu0
  %v212 = vadd.f32 0.0, %v211
  %v213 = vpop.f32.mrb[0].mxu0
  %214 = vdwg.mxu0
  %vm215 = vcmask 261120
  %216 = vst.msk [vmem:[%s2] sm:$0xff] %vm215, %v201
  %217 = vst.msk [vmem:[%s2 + $0x8] sm:$0xff] %vm215, %v204
  %218 = vst.msk [vmem:[%s2 + $0x10] sm:$0xff] %vm215, %v209
  %219 = vst.msk [vmem:[%s2 + $0x18] sm:$0xff] %vm215, %v212
  %p220 = scmp.eq.s32.totalorder 0, 0
  // Predicated region
  $region10: #{a_call__.9} parent=0 // pred_check
    %p221 = pneg %p220
  $region11: #{a_call__.9} parent=0 // pred_check_branch
    %223 = sbr.rel (%p221) target = $region13
  $region12: #{a_call__.9} parent=0 // pred_region
    %vm224 = vcmask 254976
    %225 = vst.msk [vmem:[%s3] sm:$0x3] %vm224, 0.0
  $region13: #{a_call__.9} parent=0 // pred_fallthru
    _
  %v226 = vld [vmem:[%s3] sm:$0x1]
  %v227 = vsel %vm215, %v201, 0.0
  %v228 = vsel %vm215, %v204, 0.0
  %v229 = vadd.f32 %v227, %v228
  %v230 = vsel %vm215, %v209, 0.0
  %v231 = vadd.f32 %v229, %v230
  %v232 = vsel %vm215, %v212, 0.0
  %v233 = vadd.f32 %v231, %v232
  %v234 = vrot.slane %v233, 4
  %v235 = vadd.f32 %v233, %v234
  %v236 = vrot.slane %v235, 2
  %v237 = vadd.f32 %v235, %v236
  %v238 = vrot.slane %v237, 1
  %v239 = vadd.f32 %v237, %v238
  %v240 = vadd.f32 %v226, %v239
  %vm241 = vcmask 253952
  %242 = vst.msk [vmem:[%s3] sm:$0x1] %vm241, %v240
  %v243 = vld [vmem:[%s3 + $0x1] sm:$0x1]
  %v244 = vmul.f32 %v201, %v201
  %v245 = vmul.f32 %v204, %v204
  %v246 = vmul.f32 %v209, %v209
  %v247 = vmul.f32 %v212, %v212
  %v248 = vsel %vm215, %v244, 0.0
  %v249 = vsel %vm215, %v245, 0.0
  %v250 = vadd.f32 %v248, %v249
  %v251 = vsel %vm215, %v246, 0.0
  %v252 = vadd.f32 %v250, %v251
  %v253 = vsel %vm215, %v247, 0.0
  %v254 = vadd.f32 %v252, %v253
  %v255 = vrot.slane %v254, 4
  %v256 = vadd.f32 %v254, %v255
  %v257 = vrot.slane %v256, 2
  %v258 = vadd.f32 %v256, %v257
  %v259 = vrot.slane %v258, 1
  %v260 = vadd.f32 %v258, %v259
  %v261 = vadd.f32 %v243, %v260
  %262 = vst.msk [vmem:[%s3 + $0x1] sm:$0x1] %vm241, %v261
  // Predicated region
  $region14: #{a_call__.9} parent=0 // pred_check
    _
  $region15: #{a_call__.9} parent=0 // pred_check_branch
    %264 = sbr.rel (0) target = $region17
  $region16: #{a_call__.9} parent=0 // pred_region
    _
  $region17: #{a_call__.9} parent=0 // pred_fallthru
    _
  // Predicated region
  $region18: #{a_call__.9} parent=0 // pred_check
    _
  $region19: #{a_call__.9} parent=0 // pred_check_branch
    %266 = sbr.rel (0) target = $region21
  $region20: #{a_call__.9} parent=0 // pred_region
    _
  $region21: #{a_call__.9} parent=0 // pred_fallthru
    _
  // Predicated region
  $region22: #{a_call__.9} parent=0 // pred_check
    _
  $region23: #{a_call__.9} parent=0 // pred_check_branch
    %268 = sbr.rel (0) target = $region25
  $region24: #{a_call__.9} parent=0 // pred_region
    _
  $region25: #{a_call__.9} parent=0 // pred_fallthru
    _
  // Predicated region
  $region26: #{a_call__.9} parent=0 // pred_check
    _
  $region27: #{a_call__.9} parent=0 // pred_check_branch
    %270 = sbr.rel (0) target = $region29
  $region28: #{a_call__.9} parent=0 // pred_region
    _
  $region29: #{a_call__.9} parent=0 // pred_fallthru
    _

// kernel: a_call__.10
$region0: #{a_call__.10}
  #allocation0 [shape = 'u32[]', space=smem, size = 0x4, offset = 0x4, fixed_abs, tag = 'smem constant byte address 0x4 - core index']
  #allocation1 [shape = 'u32[144,128]{1,0:T(1,128)}', space=vmem, size = 0x12000, scoped, tag = 'internal scratch']
  %s0 = inlined_call_operand.vmem [shape: f32[32,32], index: 0, kind: input, shape index: {}]
  %s1 = inlined_call_operand.vmem [shape: f32[1,32], index: 1, kind: input, shape index: {}]
  %s2 = inlined_call_operand.vmem [shape: f32[1,32], index: 2, kind: input, shape index: {}]
  %s3 = inlined_call_operand.vmem [shape: f32[32,32], index: 3, kind: output, shape index: {}]
  %s4 = sld [smem:[#allocation0]]
  $region22: #{a_call__.10} parent=0
    _
  %s6 = ssub.s32 1, %s4
  %s7 = scalar_select 0, %s6, %s4
  // Predicated region
  $region2: #{a_call__.10} parent=0 // pred_check
    _
  $region3: #{a_call__.10} parent=0 // pred_check_branch
    %9 = sbr.rel (0) target = $region5
  $region4: #{a_call__.10} parent=0 // pred_region
    _
  $region5: #{a_call__.10} parent=0 // pred_fallthru
    _
  // Predicated region
  $region6: #{a_call__.10} parent=0 // pred_check
    _
  $region7: #{a_call__.10} parent=0 // pred_check_branch
    %11 = sbr.rel (0) target = $region9
  $region8: #{a_call__.10} parent=0 // pred_region
    _
  $region9: #{a_call__.10} parent=0 // pred_fallthru
    _
  // Predicated region
  $region10: #{a_call__.10} parent=0 // pred_check
    _
  $region11: #{a_call__.10} parent=0 // pred_check_branch
    %13 = sbr.rel (0) target = $region13
  $region12: #{a_call__.10} parent=0 // pred_region
    _
  $region13: #{a_call__.10} parent=0 // pred_fallthru
    _
  %v14 = vld [vmem:[%s0] sm:$0xff]
  %v15 = vld [vmem:[%s0 + $0x8] sm:$0xff]
  %v16 = vld [vmem:[%s0 + $0x10] sm:$0xff]
  %v17 = vld [vmem:[%s0 + $0x18] sm:$0xff]
  %v18 = vld [vmem:[%s1] sm:$0x1]
  %v20 = vlaneseq
  %v21 = vshrl.u32 %v20, 7
  %v22 = vsub.s32 0, %v21
  %v23 = vrot.slane %v18, %v22
  %v25 = vmul.f32 %v14, %v23
  %v26 = vmul.f32 %v15, %v23
  %v27 = vmul.f32 %v16, %v23
  %v28 = vmul.f32 %v17, %v23
  %v29 = vld [vmem:[%s2] sm:$0x1]
  %v31 = vlaneseq
  %v32 = vshrl.u32 %v31, 7
  %v33 = vsub.s32 0, %v32
  %v34 = vrot.slane %v29, %v33
  %v36 = vadd.f32 %v25, %v34
  %v37 = vadd.f32 %v26, %v34
  %v38 = vadd.f32 %v27, %v34
  %v39 = vadd.f32 %v28, %v34
  %vm40 = vcmp.ge.f32.partialorder %v36, 0.0
  %vm41 = vcmp.ge.f32.partialorder %v37, 0.0
  %vm42 = vcmp.ge.f32.partialorder %v38, 0.0
  %vm43 = vcmp.ge.f32.partialorder %v39, 0.0
  %v44 = vmul.f32 %v36, 0.01
  %v45 = vmul.f32 %v37, 0.01
  %v46 = vmul.f32 %v38, 0.01
  %v47 = vmul.f32 %v39, 0.01
  %v48 = vsel %vm40, %v36, %v44
  %v49 = vsel %vm41, %v37, %v45
  %v50 = vsel %vm42, %v38, %v46
  %v51 = vsel %vm43, %v39, %v47
  %vm52 = vcmask 261120
  %53 = vst.msk [vmem:[%s3] sm:$0xff] %vm52, %v48
  %54 = vst.msk [vmem:[%s3 + $0x8] sm:$0xff] %vm52, %v49
  %55 = vst.msk [vmem:[%s3 + $0x10] sm:$0xff] %vm52, %v50
  %56 = vst.msk [vmem:[%s3 + $0x18] sm:$0xff] %vm52, %v51
  // Predicated region
  $region14: #{a_call__.10} parent=0 // pred_check
    _
  $region15: #{a_call__.10} parent=0 // pred_check_branch
    %58 = sbr.rel (0) target = $region17
  $region16: #{a_call__.10} parent=0 // pred_region
    _
  $region17: #{a_call__.10} parent=0 // pred_fallthru
    _
  // Predicated region
  $region18: #{a_call__.10} parent=0 // pred_check
    _
  $region19: #{a_call__.10} parent=0 // pred_check_branch
    %60 = sbr.rel (0) target = $region21
  $region20: #{a_call__.10} parent=0 // pred_region
    _
  $region21: #{a_call__.10} parent=0 // pred_fallthru
    _

// kernel: a_call__.11
$region0: #{a_call__.11}
  #allocation0 [shape = 'u32[]', space=smem, size = 0x4, offset = 0x4, fixed_abs, tag = 'smem constant byte address 0x4 - core index']
  #allocation1 [shape = 'u32[144,128]{1,0:T(1,128)}', space=vmem, size = 0x12000, scoped, tag = 'internal scratch']
  #allocation2 [shape = 'f32[1,1]{1,0:T(1,128)S(1)}', space=vmem, size = 0x200, scoped, tag = 'scoped memory for a_call__.11']
  %s0 = inlined_call_operand.vmem [shape: f32[2,512], index: 0, kind: input, shape index: {}]
  %s1 = inlined_call_operand.vmem [shape: f32[1,512], index: 1, kind: input, shape index: {}]
  %s2 = inlined_call_operand.<no memory space> [shape: f32[1,1], index: 2, kind: input, shape index: {}]
  %s3 = inlined_call_operand.vmem [shape: f32[2,1], index: 3, kind: output, shape index: {}]
  %s4 = sld [smem:[#allocation0]]
  $region22: #{a_call__.11} parent=0
    _
  %s6 = ssub.s32 1, %s4
  %s7 = scalar_select 0, %s6, %s4
  %v8 = vstv %s2
  %9 = vst [vmem:[#allocation2] sm:$0x1] %v8
  // Predicated region
  $region2: #{a_call__.11} parent=0 // pred_check
    _
  $region3: #{a_call__.11} parent=0 // pred_check_branch
    %11 = sbr.rel (0) target = $region5
  $region4: #{a_call__.11} parent=0 // pred_region
    _
  $region5: #{a_call__.11} parent=0 // pred_fallthru
    _
  // Predicated region
  $region6: #{a_call__.11} parent=0 // pred_check
    _
  $region7: #{a_call__.11} parent=0 // pred_check_branch
    %13 = sbr.rel (0) target = $region9
  $region8: #{a_call__.11} parent=0 // pred_region
    _
  $region9: #{a_call__.11} parent=0 // pred_fallthru
    _
  // Predicated region
  $region10: #{a_call__.11} parent=0 // pred_check
    _
  $region11: #{a_call__.11} parent=0 // pred_check_branch
    %15 = sbr.rel (0) target = $region13
  $region12: #{a_call__.11} parent=0 // pred_region
    _
  $region13: #{a_call__.11} parent=0 // pred_fallthru
    _
  %v16 = vld [vmem:[%s0] sm:$0xff]
  %v17 = vld [vmem:[%s1] sm:$0xf]
  %v19 = vlaneseq
  %v20 = vshrl.u32 %v19, 7
  %v21 = vsub.s32 0, %v20
  %v22 = vrot.slane %v17, %v21
  %v23 = vlaneseq
  %v24 = vshrl.u32 %v23, 7
  %v25 = vsub.s32 1, %v24
  %v26 = vrot.slane %v17, %v25
  %v27 = vlaneseq
  %v28 = vshrl.u32 %v27, 7
  %v29 = vsub.s32 2, %v28
  %v30 = vrot.slane %v17, %v29
  %v31 = vlaneseq
  %v32 = vshrl.u32 %v31, 7
  %v33 = vsub.s32 3, %v32
  %v34 = vrot.slane %v17, %v33
  %v35 = vcombine.low %v22, %v26
  %v36 = vcombine.low %v30, %v34
  %v38 = vunpack.c.l.s4 1983009808
  %v39 = vunpack.c.0.s8 %v38
  %v40 = vlaneseq
  %v41 = vshrl.u32 %v40, 7
  %v42 = vsub.s32 %v39, %v41
  %v43 = vrot.slane %v35, %v42
  %v45 = vunpack.c.l.s4 1983009808
  %v46 = vunpack.c.0.s8 %v45
  %v47 = vlaneseq
  %v48 = vshrl.u32 %v47, 7
  %v49 = vsub.s32 %v46, %v48
  %v50 = vrot.slane %v36, %v49
  %v51 = vcombine.low %v43, %v50
  %v53 = vmul.f32 %v16, %v51
  %v55 = vcombine.high %v53, %v53
  %v57 = vunpack.c.l.s4 1983009808
  %v58 = vunpack.c.0.s8 %v57
  %v59 = vlaneseq
  %v60 = vshrl.u32 %v59, 7
  %v61 = vsub.s32 %v58, %v60
  %v62 = vrot.slane %v53, %v61
  %v64 = vunpack.c.l.s4 1983009808
  %v65 = vunpack.c.0.s8 %v64
  %v66 = vlaneseq
  %v67 = vshrl.u32 %v66, 7
  %v68 = vsub.s32 %v65, %v67
  %v69 = vrot.slane %v55, %v68
  %v70 = vcombine.high %v62, %v62
  %v71 = vcombine.high %v69, %v69
  %vm76 = vcmask 1041408
  %v77 = vsel %vm76, %v62, 0.0
  %v78 = vsel %vm76, %v70, 0.0
  %v79 = vadd.f32 %v77, %v78
  %v80 = vsel %vm76, %v69, 0.0
  %v81 = vadd.f32 %v79, %v80
  %v82 = vsel %vm76, %v71, 0.0
  %v83 = vadd.f32 %v81, %v82
  %84 = vadd.xlane.f32.xlu0 %v83
  %v85 = vpop.xlane.xlu0 %84
  %v86 = vld [vmem:[#allocation2] sm:$0x1]
  %v88 = vlaneseq
  %v89 = vshrl.u32 %v88, 7
  %v90 = vsub.s32 0, %v89
  %v91 = vrot.slane %v86, %v90
  %v93 = vadd.f32 %v85, %v91
  %vm94 = vcmask 1024
  %95 = vst.msk [vmem:[%s3] sm:$0x3] %vm94, %v93
  // Predicated region
  $region14: #{a_call__.11} parent=0 // pred_check
    _
  $region15: #{a_call__.11} parent=0 // pred_check_branch
    %97 = sbr.rel (0) target = $region17
  $region16: #{a_call__.11} parent=0 // pred_region
    _
  $region17: #{a_call__.11} parent=0 // pred_fallthru
    _
  // Predicated region
  $region18: #{a_call__.11} parent=0 // pred_check
    _
  $region19: #{a_call__.11} parent=0 // pred_check_branch
    %99 = sbr.rel (0) target = $region21
  $region20: #{a_call__.11} parent=0 // pred_region
    _
  $region21: #{a_call__.11} parent=0 // pred_fallthru
    _

</llo_original>
